<compile_context>
chip_gen: v6e
topology: v6e:2x2x1
jax: 0.10.0
libtpu: 0.0.40
codegen_flags: <defaults>
</compile_context>

<pallas_src>
import functools
import math

import jax
import jax.numpy as jnp
from jax import lax
from jax.experimental import pallas as pl
from jax.experimental.pallas import tpu as pltpu

# --- small, module-consistent hyper-parameters ---------------------------
N_EMBD = 32          # hidden size (scaled down from 256)
NUM_HEADS = 4
HEAD_SIZE = 8        # num_heads * head_size == n_embd, as in the chatbot model
BLOCK_SIZE = 64      # causal-mask capacity (T <= BLOCK_SIZE)
B = 2                # batch
T = 8                # sequence length


def mha_kernel(x_ref, wqkv_ref, wp_ref, bp_ref, mask_ref, o_ref, *,
               num_heads, head_size):
    """Fused multi-head causal self-attention + output projection.

    x_ref:    (N, C)         flattened batch*sequence            (N = B*T)
    wqkv_ref: (3*H, C, hs)   head-major [Wq(scaled); Wk; Wv]
    wp_ref:   (H, hs, C)     output projection, split per head
    bp_ref:   (1, C)         output projection bias
    mask_ref: (N, N)         additive mask: 0 (valid) / -big (invalid)
    o_ref:    (N, C)
    """
    x = x_ref[...]                                           # (N, C) f32
    n, c = x.shape
    H = num_heads
    hs = head_size

    # --- QKV projection: one batched dot_general over the 3*H head slabs ---
    # (no lane slicing / transposes anywhere downstream).
    w = wqkv_ref[...]                                        # (3H, C, hs)
    xb = jnp.broadcast_to(x, (3 * H, n, c))                  # hoisted, done once
    qkv = lax.dot_general(
        xb, w,
        dimension_numbers=(((2,), (1,)), ((0,), (0,))),
        preferred_element_type=jnp.float32)                  # (3H, N, hs)

    # Leading-axis slices: whole-vreg selects, no lane/sublane shuffle.
    q = qkv[:H]                                              # (H, N, hs), pre-scaled
    k = qkv[H:2 * H]                                         # (H, N, hs)
    v = qkv[2 * H:]                                          # (H, N, hs)

    # --- batched scores: contraction over head_size, batch over heads ------
    s = jnp.einsum('hqd,hkd->hqk', q, k,
                   preferred_element_type=jnp.float32)       # (H, N, N)
    s = s + mask_ref[...]                                    # block-diag causal mask

    # --- numerically stable softmax over keys -------------------------------
    s = s - jnp.max(s, axis=-1, keepdims=True)
    p = jnp.exp(s)
    denom = jnp.sum(p, axis=-1, keepdims=True)               # >= 1 (diag is valid)
    r = pl.reciprocal(denom, approx=True)                    # EUP vrcp (free slot)
    r = r * (2.0 - denom * r)                                # 1 Newton step -> ~exact
    p = p * r

    # --- per-head context ----------------------------------------------------
    ctx = jnp.einsum('hqk,hkd->hqd', p, v,
                     preferred_element_type=jnp.float32)     # (H, N, hs)

    # --- output projection: cat @ Wp == sum_h ctx_h @ Wp_h  (no concat) ------
    proj = lax.dot_general(
        ctx, wp_ref[...],
        dimension_numbers=(((2,), (1,)), ((0,), (0,))),
        preferred_element_type=jnp.float32)                  # (H, N, C)
    out = jnp.sum(proj, axis=0) + bp_ref[...]                # (N, C)
    o_ref[...] = out.astype(o_ref.dtype)


def build_fused_params(wq, wk, wv, wp):
    """One-time parameter prep (outside the kernel).

    wq/wk/wv: (H, C, hs) per-head projection weights (x @ w convention).
    wp:       (H*hs, C)  output projection (proj.weight.T).

    Returns:
      w_qkv: (3*H, C, hs)  head-major [scaled Q; K; V] slabs.
      wp_h:  (H, hs, C)    per-head output projection blocks.
    """
    h, c, hs = wq.shape
    scale = hs ** (-0.5)
    w_qkv = jnp.concatenate([wq * scale, wk, wv], axis=0)    # (3H, C, hs)
    wp_h = wp.reshape(h, hs, c)                              # rows are head-major
    return w_qkv, wp_h


def build_additive_mask(batch, seq_len, dtype=jnp.float32):
    """(B*T, B*T) additive mask for the flattened batch*seq score matrix:
    0 where same batch element AND key <= query (causal), -big elsewhere.
    Simplified predicate: same block already implies the '%' is redundant."""
    n = batch * seq_len
    idx = jnp.arange(n)
    same_block = (idx[:, None] // seq_len) == (idx[None, :] // seq_len)
    causal = idx[None, :] <= idx[:, None]
    neg_big = jnp.float32(jnp.finfo(jnp.float32).min / 2)    # finite, NaN-proof
    return jnp.where(same_block & causal, jnp.float32(0.0), neg_big).astype(dtype)


def multi_head_attention(x, w_qkv, wp_h, bp, mask):
    """x: (B, T, C); w_qkv: (3H, C, hs); wp_h: (H, hs, C); bp: (1, C); mask: (B*T, B*T)."""
    b, t, c = x.shape
    n = b * t
    h, hs = NUM_HEADS, HEAD_SIZE
    x_flat = x.reshape(n, c)

    kernel = functools.partial(mha_kernel, num_heads=h, head_size=hs)

    out_flat = pl.pallas_call(
        kernel,
        out_shape=jax.ShapeDtypeStruct((n, c), x.dtype),
        grid=(1,),                                            # whole batch in one step
        in_specs=[
            pl.BlockSpec((n, c), lambda i: (0, 0)),           # x (flattened)
            pl.BlockSpec((3 * h, c, hs), lambda i: (0, 0, 0)),  # fused QKV weights
            pl.BlockSpec((h, hs, c), lambda i: (0, 0, 0)),    # per-head proj weights
            pl.BlockSpec((1, c), lambda i: (0, 0)),           # proj bias
            pl.BlockSpec((n, n), lambda i: (0, 0)),           # additive causal mask
        ],
        out_specs=pl.BlockSpec((n, c), lambda i: (0, 0)),
        compiler_params=pltpu.CompilerParams(
            dimension_semantics=("arbitrary",)),
    )(x_flat, w_qkv, wp_h, bp, mask)
    return out_flat.reshape(b, t, c)


def reference(x, wq, wk, wv, wp, bp):
    """Pure-JAX reference mirroring the PyTorch forward (dropout = identity)."""
    outs = []
    t = x.shape[1]
    mask = jnp.tril(jnp.ones((t, t), dtype=bool))
    for h in range(NUM_HEADS):
        q = x @ wq[h]
        k = x @ wk[h]
        v = x @ wv[h]
        wei = (q @ jnp.swapaxes(k, -2, -1)) * (HEAD_SIZE ** -0.5)
        wei = jnp.where(mask, wei, -jnp.inf)
        wei = jax.nn.softmax(wei, axis=-1)
        outs.append(wei @ v)
    cat = jnp.concatenate(outs, axis=-1)
    return cat @ wp + bp[0]


if __name__ == "__main__":
    key = jax.random.PRNGKey(0)
    kx, kq, kk, kv, kp, kb = jax.random.split(key, 6)

    x = jax.random.normal(kx, (B, T, N_EMBD), dtype=jnp.float32)

    # deterministic parameter init (Linear-like uniform bounds)
    lim_qkv = 1.0 / math.sqrt(N_EMBD)
    wq = jax.random.uniform(kq, (NUM_HEADS, N_EMBD, HEAD_SIZE),
                            minval=-lim_qkv, maxval=lim_qkv, dtype=jnp.float32)
    wk = jax.random.uniform(kk, (NUM_HEADS, N_EMBD, HEAD_SIZE),
                            minval=-lim_qkv, maxval=lim_qkv, dtype=jnp.float32)
    wv = jax.random.uniform(kv, (NUM_HEADS, N_EMBD, HEAD_SIZE),
                            minval=-lim_qkv, maxval=lim_qkv, dtype=jnp.float32)
    lim_p = 1.0 / math.sqrt(NUM_HEADS * HEAD_SIZE)
    wp = jax.random.uniform(kp, (NUM_HEADS * HEAD_SIZE, N_EMBD),
                            minval=-lim_p, maxval=lim_p, dtype=jnp.float32)
    bp = jax.random.uniform(kb, (1, N_EMBD),
                            minval=-lim_p, maxval=lim_p, dtype=jnp.float32)

    # one-time (parameter-build-time) weight fusion, scale folding, mask build
    w_qkv, wp_h = build_fused_params(wq, wk, wv, wp)
    mask = build_additive_mask(B, T)
    w_qkv, wp_h, mask = jax.block_until_ready((w_qkv, wp_h, mask))

    out = multi_head_attention(x, w_qkv, wp_h, bp, mask)
    out = jax.block_until_ready(out)

    ref = reference(x, wq, wk, wv, wp, bp)
    assert out.shape == (B, T, N_EMBD)
    assert jnp.allclose(out, ref, atol=1e-4, rtol=1e-4), "mismatch vs JAX reference"

    print("KERNEL_OK")
</pallas_src>

<mosaic_0001>
module attributes {stable_mosaic.version = 11 : i64} {
  func.func @mha_kernel(%arg0: i32, %arg1: memref<16x32xf32, #tpu.memory_space<vmem>>, %arg2: memref<12x32x8xf32, #tpu.memory_space<vmem>>, %arg3: memref<4x8x32xf32, #tpu.memory_space<vmem>>, %arg4: memref<1x32xf32, #tpu.memory_space<vmem>>, %arg5: memref<16x16xf32, #tpu.memory_space<vmem>>, %arg6: memref<16x32xf32, #tpu.memory_space<vmem>>) attributes {dimension_semantics = [#tpu.dimension_semantics<arbitrary>], iteration_bounds = array<i64: 1>, scalar_prefetch = 0 : i64, scratch_operands = 0 : i64, tpu.core_type = #tpu.core_type<tc>, window_params = [{pipeline_mode = #tpu.pipeline_mode<synchronous>, transform_indices = @transform_0, window_bounds = array<i64: 16, 32>}, {pipeline_mode = #tpu.pipeline_mode<synchronous>, transform_indices = @transform_1, window_bounds = array<i64: 12, 32, 8>}, {pipeline_mode = #tpu.pipeline_mode<synchronous>, transform_indices = @transform_2, window_bounds = array<i64: 4, 8, 32>}, {pipeline_mode = #tpu.pipeline_mode<synchronous>, transform_indices = @transform_3, window_bounds = array<i64: 1, 32>}, {pipeline_mode = #tpu.pipeline_mode<synchronous>, transform_indices = @transform_4, window_bounds = array<i64: 16, 16>}, {pipeline_mode = #tpu.pipeline_mode<synchronous>, transform_indices = @transform_5, window_bounds = array<i64: 16, 32>}]} {
    %c0 = arith.constant 0 : index
    %c0_0 = arith.constant 0 : index
    %0 = vector.load %arg1[%c0, %c0_0] : memref<16x32xf32, #tpu.memory_space<vmem>>, vector<16x32xf32>
    %c0_1 = arith.constant 0 : index
    %c0_2 = arith.constant 0 : index
    %c0_3 = arith.constant 0 : index
    %1 = vector.load %arg2[%c0_1, %c0_2, %c0_3] : memref<12x32x8xf32, #tpu.memory_space<vmem>>, vector<12x32x8xf32>
    %2 = vector.shape_cast %0 : vector<16x32xf32> to vector<1x16x32xf32>
    %3 = vector.broadcast %2 : vector<1x16x32xf32> to vector<12x16x32xf32>
    %cst = arith.constant dense<0.000000e+00> : vector<12x16x8xf32>
    %4 = tpu.matmul %3, %1, %cst {dimension_numbers = #tpu.dot_dimension_numbers<[2], [1], [1], [2], [0, 0, 0, 1, 1, 2], [0], [0]>} : vector<12x16x32xf32>, vector<12x32x8xf32>, vector<12x16x8xf32> -> vector<12x16x8xf32>
    %5 = vector.extract_strided_slice %4 {offsets = [0, 0, 0], sizes = [4, 16, 8], strides = [1, 1, 1]} : vector<12x16x8xf32> to vector<4x16x8xf32>
    %6 = vector.extract_strided_slice %4 {offsets = [4, 0, 0], sizes = [4, 16, 8], strides = [1, 1, 1]} : vector<12x16x8xf32> to vector<4x16x8xf32>
    %7 = vector.extract_strided_slice %4 {offsets = [8, 0, 0], sizes = [4, 16, 8], strides = [1, 1, 1]} : vector<12x16x8xf32> to vector<4x16x8xf32>
    "tpu.trace_start"() <{level = 10 : i32, message = "hqd,hkd->hqk"}> : () -> ()
    %cst_4 = arith.constant dense<0.000000e+00> : vector<4x16x16xf32>
    %8 = tpu.matmul %5, %6, %cst_4 {dimension_numbers = #tpu.dot_dimension_numbers<[2], [2], [1], [1], [0, 0, 0, 1, 1, 1], [0], [0]>} : vector<4x16x8xf32>, vector<4x16x8xf32>, vector<4x16x16xf32> -> vector<4x16x16xf32>
    "tpu.trace_stop"() : () -> ()
    %c0_5 = arith.constant 0 : index
    %c0_6 = arith.constant 0 : index
    %9 = vector.load %arg5[%c0_5, %c0_6] : memref<16x16xf32, #tpu.memory_space<vmem>>, vector<16x16xf32>
    %10 = vector.shape_cast %9 : vector<16x16xf32> to vector<1x16x16xf32>
    %11 = vector.broadcast %10 : vector<1x16x16xf32> to vector<4x16x16xf32>
    %12 = arith.addf %8, %11 : vector<4x16x16xf32>
    %cst_7 = arith.constant dense<0xFF800000> : vector<4x16xf32>
    %13 = vector.multi_reduction <maximumf>, %12, %cst_7 [2] : vector<4x16x16xf32> to vector<4x16xf32>
    %14 = vector.shape_cast %13 : vector<4x16xf32> to vector<4x16x1xf32>
    %15 = vector.broadcast %14 : vector<4x16x1xf32> to vector<4x16x16xf32>
    %16 = arith.subf %12, %15 : vector<4x16x16xf32>
    %17 = math.exp %16 : vector<4x16x16xf32>
    %cst_8 = arith.constant dense<0.000000e+00> : vector<4x16xf32>
    %18 = vector.multi_reduction <add>, %17, %cst_8 [2] : vector<4x16x16xf32> to vector<4x16xf32>
    %19 = vector.shape_cast %18 : vector<4x16xf32> to vector<4x16x1xf32>
    %20 = tpu.reciprocal %19 {approx = true} : vector<4x16x1xf32> -> vector<4x16x1xf32>
    %21 = arith.mulf %19, %20 : vector<4x16x1xf32>
    %cst_9 = arith.constant 2.000000e+00 : f32
    %22 = vector.broadcast %cst_9 : f32 to vector<4x16x1xf32>
    %23 = arith.subf %22, %21 : vector<4x16x1xf32>
    %24 = arith.mulf %20, %23 : vector<4x16x1xf32>
    %25 = vector.broadcast %24 : vector<4x16x1xf32> to vector<4x16x16xf32>
    %26 = arith.mulf %17, %25 : vector<4x16x16xf32>
    "tpu.trace_start"() <{level = 10 : i32, message = "hqk,hkd->hqd"}> : () -> ()
    %cst_10 = arith.constant dense<0.000000e+00> : vector<4x16x8xf32>
    %27 = tpu.matmul %26, %7, %cst_10 {dimension_numbers = #tpu.dot_dimension_numbers<[2], [1], [1], [2], [0, 0, 0, 1, 1, 2], [0], [0]>} : vector<4x16x16xf32>, vector<4x16x8xf32>, vector<4x16x8xf32> -> vector<4x16x8xf32>
    "tpu.trace_stop"() : () -> ()
    %c0_11 = arith.constant 0 : index
    %c0_12 = arith.constant 0 : index
    %c0_13 = arith.constant 0 : index
    %28 = vector.load %arg3[%c0_11, %c0_12, %c0_13] : memref<4x8x32xf32, #tpu.memory_space<vmem>>, vector<4x8x32xf32>
    %cst_14 = arith.constant dense<0.000000e+00> : vector<4x16x32xf32>
    %29 = tpu.matmul %27, %28, %cst_14 {dimension_numbers = #tpu.dot_dimension_numbers<[2], [1], [1], [2], [0, 0, 0, 1, 1, 2], [0], [0]>} : vector<4x16x8xf32>, vector<4x8x32xf32>, vector<4x16x32xf32> -> vector<4x16x32xf32>
    %cst_15 = arith.constant dense<0.000000e+00> : vector<16x32xf32>
    %30 = vector.multi_reduction <add>, %29, %cst_15 [0] : vector<4x16x32xf32> to vector<16x32xf32>
    %c0_16 = arith.constant 0 : index
    %c0_17 = arith.constant 0 : index
    %31 = vector.load %arg4[%c0_16, %c0_17] : memref<1x32xf32, #tpu.memory_space<vmem>>, vector<1x32xf32>
    %32 = vector.broadcast %31 : vector<1x32xf32> to vector<16x32xf32>
    %33 = arith.addf %30, %32 : vector<16x32xf32>
    %c0_18 = arith.constant 0 : index
    %c0_19 = arith.constant 0 : index
    %34 = vector.load %arg6[%c0_18, %c0_19] : memref<16x32xf32, #tpu.memory_space<vmem>>, vector<16x32xf32>
    tpu.vector_store %arg6[%c0_18, %c0_19], %33 {strides = array<i32>} : memref<16x32xf32, #tpu.memory_space<vmem>>, vector<16x32xf32>,
    return
  }
  func.func @transform_0(%arg0: i32) -> (i32, i32) {
    %c0_i32 = arith.constant 0 : i32
    %c0_i32_0 = arith.constant 0 : i32
    %c0_i32_1 = arith.constant 0 : i32
    return %c0_i32, %c0_i32_0 : i32, i32
  }
  func.func @transform_1(%arg0: i32) -> (i32, i32, i32) {
    %c0_i32 = arith.constant 0 : i32
    %c0_i32_0 = arith.constant 0 : i32
    %c0_i32_1 = arith.constant 0 : i32
    %c0_i32_2 = arith.constant 0 : i32
    return %c0_i32, %c0_i32_0, %c0_i32_1 : i32, i32, i32
  }
  func.func @transform_2(%arg0: i32) -> (i32, i32, i32) {
    %c0_i32 = arith.constant 0 : i32
    %c0_i32_0 = arith.constant 0 : i32
    %c0_i32_1 = arith.constant 0 : i32
    %c0_i32_2 = arith.constant 0 : i32
    return %c0_i32, %c0_i32_0, %c0_i32_1 : i32, i32, i32
  }
  func.func @transform_3(%arg0: i32) -> (i32, i32) {
    %c0_i32 = arith.constant 0 : i32
    %c0_i32_0 = arith.constant 0 : i32
    %c0_i32_1 = arith.constant 0 : i32
    return %c0_i32, %c0_i32_0 : i32, i32
  }
  func.func @transform_4(%arg0: i32) -> (i32, i32) {
    %c0_i32 = arith.constant 0 : i32
    %c0_i32_0 = arith.constant 0 : i32
    %c0_i32_1 = arith.constant 0 : i32
    return %c0_i32, %c0_i32_0 : i32, i32
  }
  func.func @transform_5(%arg0: i32) -> (i32, i32) {
    %c0_i32 = arith.constant 0 : i32
    %c0_i32_0 = arith.constant 0 : i32
    %c0_i32_1 = arith.constant 0 : i32
    return %c0_i32, %c0_i32_0 : i32, i32
  }
}

</mosaic_0001>

<llo_original>
// kernel: tpu_custom_call.1
$region0: #{tpu_custom_call.1}
  #allocation0 [shape = 'u32[]', space=smem, size = 0x4, offset = 0x4, fixed_abs, tag = 'smem constant byte address 0x4 - core index']
  #allocation1 [shape = 'u32[144,128]{1,0:T(1,128)}', space=vmem, size = 0x12000, scoped, tag = 'internal scratch']
  %s0 = inlined_call_operand.vmem [shape: f32[16,32], index: 0, kind: input, shape index: {}]
  %s1 = inlined_call_operand.vmem [shape: f32[12,32,8], index: 1, kind: input, shape index: {}]
  %s2 = inlined_call_operand.vmem [shape: f32[4,8,32], index: 2, kind: input, shape index: {}]
  %s3 = inlined_call_operand.vmem [shape: f32[1,32], index: 3, kind: input, shape index: {}]
  %s4 = inlined_call_operand.vmem [shape: f32[16,16], index: 4, kind: input, shape index: {}]
  %s5 = inlined_call_operand.hbm [shape: f32[16,32], index: 5, kind: output, shape index: {}]
  %s6 = sld [smem:[#allocation0]]
  $region30: #{tpu_custom_call.1} parent=0
    _
  %s8 = ssub.s32 1, %s6
  %s9 = scalar_select 0, %s8, %s6
  $region1: #{tpu_custom_call.1} parent=0
    #allocation2 [shape = 'u8[8192]{0}', space=vmem, size = 0x2000, scoped, tag = 'output window, operand 0, single buffered']
    #allocation3 [shape = 's32[1]{0}', space=sflag, size = 0x4, scoped, tag = 'scoped memory for tpu_custom_call.1']
    %10 = vsyncpa [#allocation3], 0
    // Predicated region
    $region2: #{tpu_custom_call.1} parent=1 // pred_check
      _
    $region3: #{tpu_custom_call.1} parent=1 // pred_check_branch
      %12 = sbr.rel (0) target = $region5
    $region4: #{tpu_custom_call.1} parent=1 // pred_region
      _
    $region5: #{tpu_custom_call.1} parent=1 // pred_fallthru
      _
    // Predicated region
    $region6: #{tpu_custom_call.1} parent=1 // pred_check
      _
    $region7: #{tpu_custom_call.1} parent=1 // pred_check_branch
      %14 = sbr.rel (0) target = $region9
    $region8: #{tpu_custom_call.1} parent=1 // pred_region
      _
    $region9: #{tpu_custom_call.1} parent=1 // pred_fallthru
      _
    // Predicated region
    $region10: #{tpu_custom_call.1} parent=1 // pred_check
      _
    $region11: #{tpu_custom_call.1} parent=1 // pred_check_branch
      %16 = sbr.rel (0) target = $region13
    $region12: #{tpu_custom_call.1} parent=1 // pred_region
      _
    $region13: #{tpu_custom_call.1} parent=1 // pred_fallthru
      _
    // Predicated region
    $region14: #{tpu_custom_call.1} parent=1 // pred_check
      _
    $region15: #{tpu_custom_call.1} parent=1 // pred_check_branch
      %18 = sbr.rel (0) target = $region17
    $region16: #{tpu_custom_call.1} parent=1 // pred_region
      _
    $region17: #{tpu_custom_call.1} parent=1 // pred_fallthru
      _
    // Predicated region
    $region18: #{tpu_custom_call.1} parent=1 // pred_check
      _
    $region19: #{tpu_custom_call.1} parent=1 // pred_check_branch
      %20 = sbr.rel (0) target = $region21
    $region20: #{tpu_custom_call.1} parent=1 // pred_region
      _
    $region21: #{tpu_custom_call.1} parent=1 // pred_fallthru
      _
    %v21 = vld [vmem:[%s0] sm:$0xff]
    %v22 = vld [vmem:[%s0 + $0x8] sm:$0xff]
    %v23 = vld [vmem:[%s1] sm:$0xff]
    %v24 = vld [vmem:[%s1 + $0x8] sm:$0xff]
    %v25 = vld [vmem:[%s1 + $0x10] sm:$0xff]
    %v26 = vld [vmem:[%s1 + $0x18] sm:$0xff]
    %v27 = vld [vmem:[%s1 + $0x20] sm:$0xff]
    %v28 = vld [vmem:[%s1 + $0x28] sm:$0xff]
    %v29 = vld [vmem:[%s1 + $0x30] sm:$0xff]
    %v30 = vld [vmem:[%s1 + $0x38] sm:$0xff]
    %v31 = vld [vmem:[%s1 + $0x40] sm:$0xff]
    %v32 = vld [vmem:[%s1 + $0x48] sm:$0xff]
    %v33 = vld [vmem:[%s1 + $0x50] sm:$0xff]
    %v34 = vld [vmem:[%s1 + $0x58] sm:$0xff]
    %v35 = vld [vmem:[%s1 + $0x60] sm:$0xff]
    %v36 = vld [vmem:[%s1 + $0x68] sm:$0xff]
    %v37 = vld [vmem:[%s1 + $0x70] sm:$0xff]
    %v38 = vld [vmem:[%s1 + $0x78] sm:$0xff]
    %v39 = vld [vmem:[%s1 + $0x80] sm:$0xff]
    %v40 = vld [vmem:[%s1 + $0x88] sm:$0xff]
    %v41 = vld [vmem:[%s1 + $0x90] sm:$0xff]
    %v42 = vld [vmem:[%s1 + $0x98] sm:$0xff]
    %v43 = vld [vmem:[%s1 + $0xa0] sm:$0xff]
    %v44 = vld [vmem:[%s1 + $0xa8] sm:$0xff]
    %v45 = vld [vmem:[%s1 + $0xb0] sm:$0xff]
    %v46 = vld [vmem:[%s1 + $0xb8] sm:$0xff]
    %v47 = vld [vmem:[%s1 + $0xc0] sm:$0xff]
    %v48 = vld [vmem:[%s1 + $0xc8] sm:$0xff]
    %v49 = vld [vmem:[%s1 + $0xd0] sm:$0xff]
    %v50 = vld [vmem:[%s1 + $0xd8] sm:$0xff]
    %v51 = vld [vmem:[%s1 + $0xe0] sm:$0xff]
    %v52 = vld [vmem:[%s1 + $0xe8] sm:$0xff]
    %v53 = vld [vmem:[%s1 + $0xf0] sm:$0xff]
    %v54 = vld [vmem:[%s1 + $0xf8] sm:$0xff]
    %v55 = vld [vmem:[%s1 + $0x100] sm:$0xff]
    %v56 = vld [vmem:[%s1 + $0x108] sm:$0xff]
    %v57 = vld [vmem:[%s1 + $0x110] sm:$0xff]
    %v58 = vld [vmem:[%s1 + $0x118] sm:$0xff]
    %v59 = vld [vmem:[%s1 + $0x120] sm:$0xff]
    %v60 = vld [vmem:[%s1 + $0x128] sm:$0xff]
    %v61 = vld [vmem:[%s1 + $0x130] sm:$0xff]
    %v62 = vld [vmem:[%s1 + $0x138] sm:$0xff]
    %v63 = vld [vmem:[%s1 + $0x140] sm:$0xff]
    %v64 = vld [vmem:[%s1 + $0x148] sm:$0xff]
    %v65 = vld [vmem:[%s1 + $0x150] sm:$0xff]
    %v66 = vld [vmem:[%s1 + $0x158] sm:$0xff]
    %v67 = vld [vmem:[%s1 + $0x160] sm:$0xff]
    %v68 = vld [vmem:[%s1 + $0x168] sm:$0xff]
    %v69 = vld [vmem:[%s1 + $0x170] sm:$0xff]
    %v70 = vld [vmem:[%s1 + $0x178] sm:$0xff]
    %vm71 = vcmask 261120
    %v73 = vsel %vm71, %v21, 0
    %v76 = vsel %vm71, %v22, 0
    %78 = vmatprep.subr.mxu0 0.0
    %79 = vmatpush1.msra.mxu0 0.0
    %80 = vmatprep.subr.mxu0 0.0
    %81 = vmatpush1.msra.mxu0 0.0
    %82 = vmatprep.subr.mxu0 0.0
    %83 = vmatpush1.msra.mxu0 0.0
    %84 = vmatprep.subr.mxu0 0.0
    %85 = vmatpush1.msra.mxu0 0.0
    %86 = vmatprep.subr.mxu0 0.0
    %87 = vmatpush1.msra.mxu0 0.0
    %88 = vmatprep.subr.mxu0 0.0
    %89 = vmatpush1.msra.mxu0 0.0
    %90 = vmatprep.subr.mxu0 0.0
    %91 = vmatpush1.msra.mxu0 0.0
    %92 = vmatprep.subr.mxu0 0.0
    %93 = vmatpush1.msra.mxu0 0.0
    %94 = vmatprep.subr.mxu0 0.0
    %95 = vmatpush1.msra.mxu0 0.0
    %96 = vmatprep.subr.mxu0 0.0
    %97 = vmatpush1.msra.mxu0 0.0
    %98 = vmatprep.subr.mxu0 0.0
    %99 = vmatpush1.msra.mxu0 0.0
    %100 = vmatprep.subr.mxu0 0.0
    %101 = vmatpush1.msra.mxu0 0.0
    %102 = vmatprep.subr.mxu0 0.0
    %103 = vmatpush1.msra.mxu0 %v26
    %104 = vmatprep.subr.mxu0 0.0
    %105 = vmatpush1.msra.mxu0 %v25
    %106 = vmatprep.subr.mxu0 0.0
    %107 = vmatpush1.msra.mxu0 %v24
    %108 = vmatprep.subr.mxu0 0.0
    %109 = vmatpush1.msra.mxu0 %v23
    %110 = vmatprep.subr.mxu0 0.0
    %111 = vmatpush2.msra.mxu0 0.0
    %112 = vmatprep.subr.mxu0 0.0
    %113 = vmatpush2.msra.mxu0 0.0
    %114 = vmatprep.subr.mxu0 0.0
    %115 = vmatpush2.msra.mxu0 0.0
    %116 = vmatprep.subr.mxu0 0.0
    %117 = vmatpush2.msra.mxu0 0.0
    %118 = vmatprep.subr.mxu0 0.0
    %119 = vmatpush2.msra.mxu0 0.0
    %120 = vmatprep.subr.mxu0 0.0
    %121 = vmatpush2.msra.mxu0 0.0
    %122 = vmatprep.subr.mxu0 0.0
    %123 = vmatpush2.msra.mxu0 0.0
    %124 = vmatprep.subr.mxu0 0.0
    %125 = vmatpush2.msra.mxu0 0.0
    %126 = vmatprep.subr.mxu0 0.0
    %127 = vmatpush2.msra.mxu0 0.0
    %128 = vmatprep.subr.mxu0 0.0
    %129 = vmatpush2.msra.mxu0 0.0
    %130 = vmatprep.subr.mxu0 0.0
    %131 = vmatpush2.msra.mxu0 0.0
    %132 = vmatprep.subr.mxu0 0.0
    %133 = vmatpush2.msra.mxu0 0.0
    %134 = vmatprep.subr.mxu0 0.0
    %135 = vmatpush2.msra.mxu0 0.0
    %136 = vmatprep.subr.mxu0 0.0
    %137 = vmatpush2.msra.mxu0 0.0
    %138 = vmatprep.subr.mxu0 0.0
    %139 = vmatpush2.msra.mxu0 0.0
    %140 = vmatprep.subr.mxu0 0.0
    %141 = vmatpush2.msra.mxu0 0.0
    %142 = vmatprep.mubr.f32.mxu0 0.0
    %143 = vmatmul.mubr.f32.gmra.mxu0 %v73
    %v144 = vpop.f32.mrf.mxu0
    %v145 = vadd.f32 0.0, %v144
    %v146 = vpop.f32.mrf.mxu0
    %147 = vmatprep.mubr.f32.mxu0 0.0
    %148 = vmatmul.mubr.f32.gmra.mxu0 %v76
    %v149 = vpop.f32.mrf.mxu0
    %v150 = vadd.f32 0.0, %v149
    %v151 = vpop.f32.mrf.mxu0
    %152 = vdwg.mxu0
    %153 = vmatprep.subr.mxu0 0.0
    %154 = vmatpush1.msra.mxu0 0.0
    %155 = vmatprep.subr.mxu0 0.0
    %156 = vmatpush1.msra.mxu0 0.0
    %157 = vmatprep.subr.mxu0 0.0
    %158 = vmatpush1.msra.mxu0 0.0
    %159 = vmatprep.subr.mxu0 0.0
    %160 = vmatpush1.msra.mxu0 0.0
    %161 = vmatprep.subr.mxu0 0.0
    %162 = vmatpush1.msra.mxu0 0.0
    %163 = vmatprep.subr.mxu0 0.0
    %164 = vmatpush1.msra.mxu0 0.0
    %165 = vmatprep.subr.mxu0 0.0
    %166 = vmatpush1.msra.mxu0 0.0
    %167 = vmatprep.subr.mxu0 0.0
    %168 = vmatpush1.msra.mxu0 0.0
    %169 = vmatprep.subr.mxu0 0.0
    %170 = vmatpush1.msra.mxu0 0.0
    %171 = vmatprep.subr.mxu0 0.0
    %172 = vmatpush1.msra.mxu0 0.0
    %173 = vmatprep.subr.mxu0 0.0
    %174 = vmatpush1.msra.mxu0 0.0
    %175 = vmatprep.subr.mxu0 0.0
    %176 = vmatpush1.msra.mxu0 0.0
    %177 = vmatprep.subr.mxu0 0.0
    %178 = vmatpush1.msra.mxu0 %v30
    %179 = vmatprep.subr.mxu0 0.0
    %180 = vmatpush1.msra.mxu0 %v29
    %181 = vmatprep.subr.mxu0 0.0
    %182 = vmatpush1.msra.mxu0 %v28
    %183 = vmatprep.subr.mxu0 0.0
    %184 = vmatpush1.msra.mxu0 %v27
    %185 = vmatprep.subr.mxu0 0.0
    %186 = vmatpush2.msra.mxu0 0.0
    %187 = vmatprep.subr.mxu0 0.0
    %188 = vmatpush2.msra.mxu0 0.0
    %189 = vmatprep.subr.mxu0 0.0
    %190 = vmatpush2.msra.mxu0 0.0
    %191 = vmatprep.subr.mxu0 0.0
    %192 = vmatpush2.msra.mxu0 0.0
    %193 = vmatprep.subr.mxu0 0.0
    %194 = vmatpush2.msra.mxu0 0.0
    %195 = vmatprep.subr.mxu0 0.0
    %196 = vmatpush2.msra.mxu0 0.0
    %197 = vmatprep.subr.mxu0 0.0
    %198 = vmatpush2.msra.mxu0 0.0
    %199 = vmatprep.subr.mxu0 0.0
    %200 = vmatpush2.msra.mxu0 0.0
    %201 = vmatprep.subr.mxu0 0.0
    %202 = vmatpush2.msra.mxu0 0.0
    %203 = vmatprep.subr.mxu0 0.0
    %204 = vmatpush2.msra.mxu0 0.0
    %205 = vmatprep.subr.mxu0 0.0
    %206 = vmatpush2.msra.mxu0 0.0
    %207 = vmatprep.subr.mxu0 0.0
    %208 = vmatpush2.msra.mxu0 0.0
    %209 = vmatprep.subr.mxu0 0.0
    %210 = vmatpush2.msra.mxu0 0.0
    %211 = vmatprep.subr.mxu0 0.0
    %212 = vmatpush2.msra.mxu0 0.0
    %213 = vmatprep.subr.mxu0 0.0
    %214 = vmatpush2.msra.mxu0 0.0
    %215 = vmatprep.subr.mxu0 0.0
    %216 = vmatpush2.msra.mxu0 0.0
    %217 = vmatprep.mubr.f32.mxu0 0.0
    %218 = vmatmul.mubr.f32.gmra.mxu0 %v73
    %v219 = vpop.f32.mrf.mxu0
    %v220 = vadd.f32 0.0, %v219
    %v221 = vpop.f32.mrf.mxu0
    %222 = vmatprep.mubr.f32.mxu0 0.0
    %223 = vmatmul.mubr.f32.gmra.mxu0 %v76
    %v224 = vpop.f32.mrf.mxu0
    %v225 = vadd.f32 0.0, %v224
    %v226 = vpop.f32.mrf.mxu0
    %227 = vdwg.mxu0
    %228 = vmatprep.subr.mxu0 0.0
    %229 = vmatpush1.msra.mxu0 0.0
    %230 = vmatprep.subr.mxu0 0.0
    %231 = vmatpush1.msra.mxu0 0.0
    %232 = vmatprep.subr.mxu0 0.0
    %233 = vmatpush1.msra.mxu0 0.0
    %234 = vmatprep.subr.mxu0 0.0
    %235 = vmatpush1.msra.mxu0 0.0
    %236 = vmatprep.subr.mxu0 0.0
    %237 = vmatpush1.msra.mxu0 0.0
    %238 = vmatprep.subr.mxu0 0.0
    %239 = vmatpush1.msra.mxu0 0.0
    %240 = vmatprep.subr.mxu0 0.0
    %241 = vmatpush1.msra.mxu0 0.0
    %242 = vmatprep.subr.mxu0 0.0
    %243 = vmatpush1.msra.mxu0 0.0
    %244 = vmatprep.subr.mxu0 0.0
    %245 = vmatpush1.msra.mxu0 0.0
    %246 = vmatprep.subr.mxu0 0.0
    %247 = vmatpush1.msra.mxu0 0.0
    %248 = vmatprep.subr.mxu0 0.0
    %249 = vmatpush1.msra.mxu0 0.0
    %250 = vmatprep.subr.mxu0 0.0
    %251 = vmatpush1.msra.mxu0 0.0
    %252 = vmatprep.subr.mxu0 0.0
    %253 = vmatpush1.msra.mxu0 %v34
    %254 = vmatprep.subr.mxu0 0.0
    %255 = vmatpush1.msra.mxu0 %v33
    %256 = vmatprep.subr.mxu0 0.0
    %257 = vmatpush1.msra.mxu0 %v32
    %258 = vmatprep.subr.mxu0 0.0
    %259 = vmatpush1.msra.mxu0 %v31
    %260 = vmatprep.subr.mxu0 0.0
    %261 = vmatpush2.msra.mxu0 0.0
    %262 = vmatprep.subr.mxu0 0.0
    %263 = vmatpush2.msra.mxu0 0.0
    %264 = vmatprep.subr.mxu0 0.0
    %265 = vmatpush2.msra.mxu0 0.0
    %266 = vmatprep.subr.mxu0 0.0
    %267 = vmatpush2.msra.mxu0 0.0
    %268 = vmatprep.subr.mxu0 0.0
    %269 = vmatpush2.msra.mxu0 0.0
    %270 = vmatprep.subr.mxu0 0.0
    %271 = vmatpush2.msra.mxu0 0.0
    %272 = vmatprep.subr.mxu0 0.0
    %273 = vmatpush2.msra.mxu0 0.0
    %274 = vmatprep.subr.mxu0 0.0
    %275 = vmatpush2.msra.mxu0 0.0
    %276 = vmatprep.subr.mxu0 0.0
    %277 = vmatpush2.msra.mxu0 0.0
    %278 = vmatprep.subr.mxu0 0.0
    %279 = vmatpush2.msra.mxu0 0.0
    %280 = vmatprep.subr.mxu0 0.0
    %281 = vmatpush2.msra.mxu0 0.0
    %282 = vmatprep.subr.mxu0 0.0
    %283 = vmatpush2.msra.mxu0 0.0
    %284 = vmatprep.subr.mxu0 0.0
    %285 = vmatpush2.msra.mxu0 0.0
    %286 = vmatprep.subr.mxu0 0.0
    %287 = vmatpush2.msra.mxu0 0.0
    %288 = vmatprep.subr.mxu0 0.0
    %289 = vmatpush2.msra.mxu0 0.0
    %290 = vmatprep.subr.mxu0 0.0
    %291 = vmatpush2.msra.mxu0 0.0
    %292 = vmatprep.mubr.f32.mxu0 0.0
    %293 = vmatmul.mubr.f32.gmra.mxu0 %v73
    %v294 = vpop.f32.mrf.mxu0
    %v295 = vadd.f32 0.0, %v294
    %v296 = vpop.f32.mrf.mxu0
    %297 = vmatprep.mubr.f32.mxu0 0.0
    %298 = vmatmul.mubr.f32.gmra.mxu0 %v76
    %v299 = vpop.f32.mrf.mxu0
    %v300 = vadd.f32 0.0, %v299
    %v301 = vpop.f32.mrf.mxu0
    %302 = vdwg.mxu0
    %303 = vmatprep.subr.mxu0 0.0
    %304 = vmatpush1.msra.mxu0 0.0
    %305 = vmatprep.subr.mxu0 0.0
    %306 = vmatpush1.msra.mxu0 0.0
    %307 = vmatprep.subr.mxu0 0.0
    %308 = vmatpush1.msra.mxu0 0.0
    %309 = vmatprep.subr.mxu0 0.0
    %310 = vmatpush1.msra.mxu0 0.0
    %311 = vmatprep.subr.mxu0 0.0
    %312 = vmatpush1.msra.mxu0 0.0
    %313 = vmatprep.subr.mxu0 0.0
    %314 = vmatpush1.msra.mxu0 0.0
    %315 = vmatprep.subr.mxu0 0.0
    %316 = vmatpush1.msra.mxu0 0.0
    %317 = vmatprep.subr.mxu0 0.0
    %318 = vmatpush1.msra.mxu0 0.0
    %319 = vmatprep.subr.mxu0 0.0
    %320 = vmatpush1.msra.mxu0 0.0
    %321 = vmatprep.subr.mxu0 0.0
    %322 = vmatpush1.msra.mxu0 0.0
    %323 = vmatprep.subr.mxu0 0.0
    %324 = vmatpush1.msra.mxu0 0.0
    %325 = vmatprep.subr.mxu0 0.0
    %326 = vmatpush1.msra.mxu0 0.0
    %327 = vmatprep.subr.mxu0 0.0
    %328 = vmatpush1.msra.mxu0 %v38
    %329 = vmatprep.subr.mxu0 0.0
    %330 = vmatpush1.msra.mxu0 %v37
    %331 = vmatprep.subr.mxu0 0.0
    %332 = vmatpush1.msra.mxu0 %v36
    %333 = vmatprep.subr.mxu0 0.0
    %334 = vmatpush1.msra.mxu0 %v35
    %335 = vmatprep.subr.mxu0 0.0
    %336 = vmatpush2.msra.mxu0 0.0
    %337 = vmatprep.subr.mxu0 0.0
    %338 = vmatpush2.msra.mxu0 0.0
    %339 = vmatprep.subr.mxu0 0.0
    %340 = vmatpush2.msra.mxu0 0.0
    %341 = vmatprep.subr.mxu0 0.0
    %342 = vmatpush2.msra.mxu0 0.0
    %343 = vmatprep.subr.mxu0 0.0
    %344 = vmatpush2.msra.mxu0 0.0
    %345 = vmatprep.subr.mxu0 0.0
    %346 = vmatpush2.msra.mxu0 0.0
    %347 = vmatprep.subr.mxu0 0.0
    %348 = vmatpush2.msra.mxu0 0.0
    %349 = vmatprep.subr.mxu0 0.0
    %350 = vmatpush2.msra.mxu0 0.0
    %351 = vmatprep.subr.mxu0 0.0
    %352 = vmatpush2.msra.mxu0 0.0
    %353 = vmatprep.subr.mxu0 0.0
    %354 = vmatpush2.msra.mxu0 0.0
    %355 = vmatprep.subr.mxu0 0.0
    %356 = vmatpush2.msra.mxu0 0.0
    %357 = vmatprep.subr.mxu0 0.0
    %358 = vmatpush2.msra.mxu0 0.0
    %359 = vmatprep.subr.mxu0 0.0
    %360 = vmatpush2.msra.mxu0 0.0
    %361 = vmatprep.subr.mxu0 0.0
    %362 = vmatpush2.msra.mxu0 0.0
    %363 = vmatprep.subr.mxu0 0.0
    %364 = vmatpush2.msra.mxu0 0.0
    %365 = vmatprep.subr.mxu0 0.0
    %366 = vmatpush2.msra.mxu0 0.0
    %367 = vmatprep.mubr.f32.mxu0 0.0
    %368 = vmatmul.mubr.f32.gmra.mxu0 %v73
    %v369 = vpop.f32.mrf.mxu0
    %v370 = vadd.f32 0.0, %v369
    %v371 = vpop.f32.mrf.mxu0
    %372 = vmatprep.mubr.f32.mxu0 0.0
    %373 = vmatmul.mubr.f32.gmra.mxu0 %v76
    %v374 = vpop.f32.mrf.mxu0
    %v375 = vadd.f32 0.0, %v374
    %v376 = vpop.f32.mrf.mxu0
    %377 = vdwg.mxu0
    %378 = vmatprep.subr.mxu0 0.0
    %379 = vmatpush1.msra.mxu0 0.0
    %380 = vmatprep.subr.mxu0 0.0
    %381 = vmatpush1.msra.mxu0 0.0
    %382 = vmatprep.subr.mxu0 0.0
    %383 = vmatpush1.msra.mxu0 0.0
    %384 = vmatprep.subr.mxu0 0.0
    %385 = vmatpush1.msra.mxu0 0.0
    %386 = vmatprep.subr.mxu0 0.0
    %387 = vmatpush1.msra.mxu0 0.0
    %388 = vmatprep.subr.mxu0 0.0
    %389 = vmatpush1.msra.mxu0 0.0
    %390 = vmatprep.subr.mxu0 0.0
    %391 = vmatpush1.msra.mxu0 0.0
    %392 = vmatprep.subr.mxu0 0.0
    %393 = vmatpush1.msra.mxu0 0.0
    %394 = vmatprep.subr.mxu0 0.0
    %395 = vmatpush1.msra.mxu0 0.0
    %396 = vmatprep.subr.mxu0 0.0
    %397 = vmatpush1.msra.mxu0 0.0
    %398 = vmatprep.subr.mxu0 0.0
    %399 = vmatpush1.msra.mxu0 0.0
    %400 = vmatprep.subr.mxu0 0.0
    %401 = vmatpush1.msra.mxu0 0.0
    %402 = vmatprep.subr.mxu0 0.0
    %403 = vmatpush1.msra.mxu0 %v42
    %404 = vmatprep.subr.mxu0 0.0
    %405 = vmatpush1.msra.mxu0 %v41
    %406 = vmatprep.subr.mxu0 0.0
    %407 = vmatpush1.msra.mxu0 %v40
    %408 = vmatprep.subr.mxu0 0.0
    %409 = vmatpush1.msra.mxu0 %v39
    %410 = vmatprep.subr.mxu0 0.0
    %411 = vmatpush2.msra.mxu0 0.0
    %412 = vmatprep.subr.mxu0 0.0
    %413 = vmatpush2.msra.mxu0 0.0
    %414 = vmatprep.subr.mxu0 0.0
    %415 = vmatpush2.msra.mxu0 0.0
    %416 = vmatprep.subr.mxu0 0.0
    %417 = vmatpush2.msra.mxu0 0.0
    %418 = vmatprep.subr.mxu0 0.0
    %419 = vmatpush2.msra.mxu0 0.0
    %420 = vmatprep.subr.mxu0 0.0
    %421 = vmatpush2.msra.mxu0 0.0
    %422 = vmatprep.subr.mxu0 0.0
    %423 = vmatpush2.msra.mxu0 0.0
    %424 = vmatprep.subr.mxu0 0.0
    %425 = vmatpush2.msra.mxu0 0.0
    %426 = vmatprep.subr.mxu0 0.0
    %427 = vmatpush2.msra.mxu0 0.0
    %428 = vmatprep.subr.mxu0 0.0
    %429 = vmatpush2.msra.mxu0 0.0
    %430 = vmatprep.subr.mxu0 0.0
    %431 = vmatpush2.msra.mxu0 0.0
    %432 = vmatprep.subr.mxu0 0.0
    %433 = vmatpush2.msra.mxu0 0.0
    %434 = vmatprep.subr.mxu0 0.0
    %435 = vmatpush2.msra.mxu0 0.0
    %436 = vmatprep.subr.mxu0 0.0
    %437 = vmatpush2.msra.mxu0 0.0
    %438 = vmatprep.subr.mxu0 0.0
    %439 = vmatpush2.msra.mxu0 0.0
    %440 = vmatprep.subr.mxu0 0.0
    %441 = vmatpush2.msra.mxu0 0.0
    %442 = vmatprep.mubr.f32.mxu0 0.0
    %443 = vmatmul.mubr.f32.gmra.mxu0 %v73
    %v444 = vpop.f32.mrf.mxu0
    %v445 = vadd.f32 0.0, %v444
    %v446 = vpop.f32.mrf.mxu0
    %447 = vmatprep.mubr.f32.mxu0 0.0
    %448 = vmatmul.mubr.f32.gmra.mxu0 %v76
    %v449 = vpop.f32.mrf.mxu0
    %v450 = vadd.f32 0.0, %v449
    %v451 = vpop.f32.mrf.mxu0
    %452 = vdwg.mxu0
    %453 = vmatprep.subr.mxu0 0.0
    %454 = vmatpush1.msra.mxu0 0.0
    %455 = vmatprep.subr.mxu0 0.0
    %456 = vmatpush1.msra.mxu0 0.0
    %457 = vmatprep.subr.mxu0 0.0
    %458 = vmatpush1.msra.mxu0 0.0
    %459 = vmatprep.subr.mxu0 0.0
    %460 = vmatpush1.msra.mxu0 0.0
    %461 = vmatprep.subr.mxu0 0.0
    %462 = vmatpush1.msra.mxu0 0.0
    %463 = vmatprep.subr.mxu0 0.0
    %464 = vmatpush1.msra.mxu0 0.0
    %465 = vmatprep.subr.mxu0 0.0
    %466 = vmatpush1.msra.mxu0 0.0
    %467 = vmatprep.subr.mxu0 0.0
    %468 = vmatpush1.msra.mxu0 0.0
    %469 = vmatprep.subr.mxu0 0.0
    %470 = vmatpush1.msra.mxu0 0.0
    %471 = vmatprep.subr.mxu0 0.0
    %472 = vmatpush1.msra.mxu0 0.0
    %473 = vmatprep.subr.mxu0 0.0
    %474 = vmatpush1.msra.mxu0 0.0
    %475 = vmatprep.subr.mxu0 0.0
    %476 = vmatpush1.msra.mxu0 0.0
    %477 = vmatprep.subr.mxu0 0.0
    %478 = vmatpush1.msra.mxu0 %v46
    %479 = vmatprep.subr.mxu0 0.0
    %480 = vmatpush1.msra.mxu0 %v45
    %481 = vmatprep.subr.mxu0 0.0
    %482 = vmatpush1.msra.mxu0 %v44
    %483 = vmatprep.subr.mxu0 0.0
    %484 = vmatpush1.msra.mxu0 %v43
    %485 = vmatprep.subr.mxu0 0.0
    %486 = vmatpush2.msra.mxu0 0.0
    %487 = vmatprep.subr.mxu0 0.0
    %488 = vmatpush2.msra.mxu0 0.0
    %489 = vmatprep.subr.mxu0 0.0
    %490 = vmatpush2.msra.mxu0 0.0
    %491 = vmatprep.subr.mxu0 0.0
    %492 = vmatpush2.msra.mxu0 0.0
    %493 = vmatprep.subr.mxu0 0.0
    %494 = vmatpush2.msra.mxu0 0.0
    %495 = vmatprep.subr.mxu0 0.0
    %496 = vmatpush2.msra.mxu0 0.0
    %497 = vmatprep.subr.mxu0 0.0
    %498 = vmatpush2.msra.mxu0 0.0
    %499 = vmatprep.subr.mxu0 0.0
    %500 = vmatpush2.msra.mxu0 0.0
    %501 = vmatprep.subr.mxu0 0.0
    %502 = vmatpush2.msra.mxu0 0.0
    %503 = vmatprep.subr.mxu0 0.0
    %504 = vmatpush2.msra.mxu0 0.0
    %505 = vmatprep.subr.mxu0 0.0
    %506 = vmatpush2.msra.mxu0 0.0
    %507 = vmatprep.subr.mxu0 0.0
    %508 = vmatpush2.msra.mxu0 0.0
    %509 = vmatprep.subr.mxu0 0.0
    %510 = vmatpush2.msra.mxu0 0.0
    %511 = vmatprep.subr.mxu0 0.0
    %512 = vmatpush2.msra.mxu0 0.0
    %513 = vmatprep.subr.mxu0 0.0
    %514 = vmatpush2.msra.mxu0 0.0
    %515 = vmatprep.subr.mxu0 0.0
    %516 = vmatpush2.msra.mxu0 0.0
    %517 = vmatprep.mubr.f32.mxu0 0.0
    %518 = vmatmul.mubr.f32.gmra.mxu0 %v73
    %v519 = vpop.f32.mrf.mxu0
    %v520 = vadd.f32 0.0, %v519
    %v521 = vpop.f32.mrf.mxu0
    %522 = vmatprep.mubr.f32.mxu0 0.0
    %523 = vmatmul.mubr.f32.gmra.mxu0 %v76
    %v524 = vpop.f32.mrf.mxu0
    %v525 = vadd.f32 0.0, %v524
    %v526 = vpop.f32.mrf.mxu0
    %527 = vdwg.mxu0
    %528 = vmatprep.subr.mxu0 0.0
    %529 = vmatpush1.msra.mxu0 0.0
    %530 = vmatprep.subr.mxu0 0.0
    %531 = vmatpush1.msra.mxu0 0.0
    %532 = vmatprep.subr.mxu0 0.0
    %533 = vmatpush1.msra.mxu0 0.0
    %534 = vmatprep.subr.mxu0 0.0
    %535 = vmatpush1.msra.mxu0 0.0
    %536 = vmatprep.subr.mxu0 0.0
    %537 = vmatpush1.msra.mxu0 0.0
    %538 = vmatprep.subr.mxu0 0.0
    %539 = vmatpush1.msra.mxu0 0.0
    %540 = vmatprep.subr.mxu0 0.0
    %541 = vmatpush1.msra.mxu0 0.0
    %542 = vmatprep.subr.mxu0 0.0
    %543 = vmatpush1.msra.mxu0 0.0
    %544 = vmatprep.subr.mxu0 0.0
    %545 = vmatpush1.msra.mxu0 0.0
    %546 = vmatprep.subr.mxu0 0.0
    %547 = vmatpush1.msra.mxu0 0.0
    %548 = vmatprep.subr.mxu0 0.0
    %549 = vmatpush1.msra.mxu0 0.0
    %550 = vmatprep.subr.mxu0 0.0
    %551 = vmatpush1.msra.mxu0 0.0
    %552 = vmatprep.subr.mxu0 0.0
    %553 = vmatpush1.msra.mxu0 %v50
    %554 = vmatprep.subr.mxu0 0.0
    %555 = vmatpush1.msra.mxu0 %v49
    %556 = vmatprep.subr.mxu0 0.0
    %557 = vmatpush1.msra.mxu0 %v48
    %558 = vmatprep.subr.mxu0 0.0
    %559 = vmatpush1.msra.mxu0 %v47
    %560 = vmatprep.subr.mxu0 0.0
    %561 = vmatpush2.msra.mxu0 0.0
    %562 = vmatprep.subr.mxu0 0.0
    %563 = vmatpush2.msra.mxu0 0.0
    %564 = vmatprep.subr.mxu0 0.0
    %565 = vmatpush2.msra.mxu0 0.0
    %566 = vmatprep.subr.mxu0 0.0
    %567 = vmatpush2.msra.mxu0 0.0
    %568 = vmatprep.subr.mxu0 0.0
    %569 = vmatpush2.msra.mxu0 0.0
    %570 = vmatprep.subr.mxu0 0.0
    %571 = vmatpush2.msra.mxu0 0.0
    %572 = vmatprep.subr.mxu0 0.0
    %573 = vmatpush2.msra.mxu0 0.0
    %574 = vmatprep.subr.mxu0 0.0
    %575 = vmatpush2.msra.mxu0 0.0
    %576 = vmatprep.subr.mxu0 0.0
    %577 = vmatpush2.msra.mxu0 0.0
    %578 = vmatprep.subr.mxu0 0.0
    %579 = vmatpush2.msra.mxu0 0.0
    %580 = vmatprep.subr.mxu0 0.0
    %581 = vmatpush2.msra.mxu0 0.0
    %582 = vmatprep.subr.mxu0 0.0
    %583 = vmatpush2.msra.mxu0 0.0
    %584 = vmatprep.subr.mxu0 0.0
    %585 = vmatpush2.msra.mxu0 0.0
    %586 = vmatprep.subr.mxu0 0.0
    %587 = vmatpush2.msra.mxu0 0.0
    %588 = vmatprep.subr.mxu0 0.0
    %589 = vmatpush2.msra.mxu0 0.0
    %590 = vmatprep.subr.mxu0 0.0
    %591 = vmatpush2.msra.mxu0 0.0
    %592 = vmatprep.mubr.f32.mxu0 0.0
    %593 = vmatmul.mubr.f32.gmra.mxu0 %v73
    %v594 = vpop.f32.mrf.mxu0
    %v595 = vadd.f32 0.0, %v594
    %v596 = vpop.f32.mrf.mxu0
    %597 = vmatprep.mubr.f32.mxu0 0.0
    %598 = vmatmul.mubr.f32.gmra.mxu0 %v76
    %v599 = vpop.f32.mrf.mxu0
    %v600 = vadd.f32 0.0, %v599
    %v601 = vpop.f32.mrf.mxu0
    %602 = vdwg.mxu0
    %603 = vmatprep.subr.mxu0 0.0
    %604 = vmatpush1.msra.mxu0 0.0
    %605 = vmatprep.subr.mxu0 0.0
    %606 = vmatpush1.msra.mxu0 0.0
    %607 = vmatprep.subr.mxu0 0.0
    %608 = vmatpush1.msra.mxu0 0.0
    %609 = vmatprep.subr.mxu0 0.0
    %610 = vmatpush1.msra.mxu0 0.0
    %611 = vmatprep.subr.mxu0 0.0
    %612 = vmatpush1.msra.mxu0 0.0
    %613 = vmatprep.subr.mxu0 0.0
    %614 = vmatpush1.msra.mxu0 0.0
    %615 = vmatprep.subr.mxu0 0.0
    %616 = vmatpush1.msra.mxu0 0.0
    %617 = vmatprep.subr.mxu0 0.0
    %618 = vmatpush1.msra.mxu0 0.0
    %619 = vmatprep.subr.mxu0 0.0
    %620 = vmatpush1.msra.mxu0 0.0
    %621 = vmatprep.subr.mxu0 0.0
    %622 = vmatpush1.msra.mxu0 0.0
    %623 = vmatprep.subr.mxu0 0.0
    %624 = vmatpush1.msra.mxu0 0.0
    %625 = vmatprep.subr.mxu0 0.0
    %626 = vmatpush1.msra.mxu0 0.0
    %627 = vmatprep.subr.mxu0 0.0
    %628 = vmatpush1.msra.mxu0 %v54
    %629 = vmatprep.subr.mxu0 0.0
    %630 = vmatpush1.msra.mxu0 %v53
    %631 = vmatprep.subr.mxu0 0.0
    %632 = vmatpush1.msra.mxu0 %v52
    %633 = vmatprep.subr.mxu0 0.0
    %634 = vmatpush1.msra.mxu0 %v51
    %635 = vmatprep.subr.mxu0 0.0
    %636 = vmatpush2.msra.mxu0 0.0
    %637 = vmatprep.subr.mxu0 0.0
    %638 = vmatpush2.msra.mxu0 0.0
    %639 = vmatprep.subr.mxu0 0.0
    %640 = vmatpush2.msra.mxu0 0.0
    %641 = vmatprep.subr.mxu0 0.0
    %642 = vmatpush2.msra.mxu0 0.0
    %643 = vmatprep.subr.mxu0 0.0
    %644 = vmatpush2.msra.mxu0 0.0
    %645 = vmatprep.subr.mxu0 0.0
    %646 = vmatpush2.msra.mxu0 0.0
    %647 = vmatprep.subr.mxu0 0.0
    %648 = vmatpush2.msra.mxu0 0.0
    %649 = vmatprep.subr.mxu0 0.0
    %650 = vmatpush2.msra.mxu0 0.0
    %651 = vmatprep.subr.mxu0 0.0
    %652 = vmatpush2.msra.mxu0 0.0
    %653 = vmatprep.subr.mxu0 0.0
    %654 = vmatpush2.msra.mxu0 0.0
    %655 = vmatprep.subr.mxu0 0.0
    %656 = vmatpush2.msra.mxu0 0.0
    %657 = vmatprep.subr.mxu0 0.0
    %658 = vmatpush2.msra.mxu0 0.0
    %659 = vmatprep.subr.mxu0 0.0
    %660 = vmatpush2.msra.mxu0 0.0
    %661 = vmatprep.subr.mxu0 0.0
    %662 = vmatpush2.msra.mxu0 0.0
    %663 = vmatprep.subr.mxu0 0.0
    %664 = vmatpush2.msra.mxu0 0.0
    %665 = vmatprep.subr.mxu0 0.0
    %666 = vmatpush2.msra.mxu0 0.0
    %667 = vmatprep.mubr.f32.mxu0 0.0
    %668 = vmatmul.mubr.f32.gmra.mxu0 %v73
    %v669 = vpop.f32.mrf.mxu0
    %v670 = vadd.f32 0.0, %v669
    %v671 = vpop.f32.mrf.mxu0
    %672 = vmatprep.mubr.f32.mxu0 0.0
    %673 = vmatmul.mubr.f32.gmra.mxu0 %v76
    %v674 = vpop.f32.mrf.mxu0
    %v675 = vadd.f32 0.0, %v674
    %v676 = vpop.f32.mrf.mxu0
    %677 = vdwg.mxu0
    %678 = vmatprep.subr.mxu0 0.0
    %679 = vmatpush1.msra.mxu0 0.0
    %680 = vmatprep.subr.mxu0 0.0
    %681 = vmatpush1.msra.mxu0 0.0
    %682 = vmatprep.subr.mxu0 0.0
    %683 = vmatpush1.msra.mxu0 0.0
    %684 = vmatprep.subr.mxu0 0.0
    %685 = vmatpush1.msra.mxu0 0.0
    %686 = vmatprep.subr.mxu0 0.0
    %687 = vmatpush1.msra.mxu0 0.0
    %688 = vmatprep.subr.mxu0 0.0
    %689 = vmatpush1.msra.mxu0 0.0
    %690 = vmatprep.subr.mxu0 0.0
    %691 = vmatpush1.msra.mxu0 0.0
    %692 = vmatprep.subr.mxu0 0.0
    %693 = vmatpush1.msra.mxu0 0.0
    %694 = vmatprep.subr.mxu0 0.0
    %695 = vmatpush1.msra.mxu0 0.0
    %696 = vmatprep.subr.mxu0 0.0
    %697 = vmatpush1.msra.mxu0 0.0
    %698 = vmatprep.subr.mxu0 0.0
    %699 = vmatpush1.msra.mxu0 0.0
    %700 = vmatprep.subr.mxu0 0.0
    %701 = vmatpush1.msra.mxu0 0.0
    %702 = vmatprep.subr.mxu0 0.0
    %703 = vmatpush1.msra.mxu0 %v58
    %704 = vmatprep.subr.mxu0 0.0
    %705 = vmatpush1.msra.mxu0 %v57
    %706 = vmatprep.subr.mxu0 0.0
    %707 = vmatpush1.msra.mxu0 %v56
    %708 = vmatprep.subr.mxu0 0.0
    %709 = vmatpush1.msra.mxu0 %v55
    %710 = vmatprep.subr.mxu0 0.0
    %711 = vmatpush2.msra.mxu0 0.0
    %712 = vmatprep.subr.mxu0 0.0
    %713 = vmatpush2.msra.mxu0 0.0
    %714 = vmatprep.subr.mxu0 0.0
    %715 = vmatpush2.msra.mxu0 0.0
    %716 = vmatprep.subr.mxu0 0.0
    %717 = vmatpush2.msra.mxu0 0.0
    %718 = vmatprep.subr.mxu0 0.0
    %719 = vmatpush2.msra.mxu0 0.0
    %720 = vmatprep.subr.mxu0 0.0
    %721 = vmatpush2.msra.mxu0 0.0
    %722 = vmatprep.subr.mxu0 0.0
    %723 = vmatpush2.msra.mxu0 0.0
    %724 = vmatprep.subr.mxu0 0.0
    %725 = vmatpush2.msra.mxu0 0.0
    %726 = vmatprep.subr.mxu0 0.0
    %727 = vmatpush2.msra.mxu0 0.0
    %728 = vmatprep.subr.mxu0 0.0
    %729 = vmatpush2.msra.mxu0 0.0
    %730 = vmatprep.subr.mxu0 0.0
    %731 = vmatpush2.msra.mxu0 0.0
    %732 = vmatprep.subr.mxu0 0.0
    %733 = vmatpush2.msra.mxu0 0.0
    %734 = vmatprep.subr.mxu0 0.0
    %735 = vmatpush2.msra.mxu0 0.0
    %736 = vmatprep.subr.mxu0 0.0
    %737 = vmatpush2.msra.mxu0 0.0
    %738 = vmatprep.subr.mxu0 0.0
    %739 = vmatpush2.msra.mxu0 0.0
    %740 = vmatprep.subr.mxu0 0.0
    %741 = vmatpush2.msra.mxu0 0.0
    %742 = vmatprep.mubr.f32.mxu0 0.0
    %743 = vmatmul.mubr.f32.gmra.mxu0 %v73
    %v744 = vpop.f32.mrf.mxu0
    %v745 = vadd.f32 0.0, %v744
    %v746 = vpop.f32.mrf.mxu0
    %747 = vmatprep.mubr.f32.mxu0 0.0
    %748 = vmatmul.mubr.f32.gmra.mxu0 %v76
    %v749 = vpop.f32.mrf.mxu0
    %v750 = vadd.f32 0.0, %v749
    %v751 = vpop.f32.mrf.mxu0
    %752 = vdwg.mxu0
    %753 = vmatprep.subr.mxu0 0.0
    %754 = vmatpush1.msra.mxu0 0.0
    %755 = vmatprep.subr.mxu0 0.0
    %756 = vmatpush1.msra.mxu0 0.0
    %757 = vmatprep.subr.mxu0 0.0
    %758 = vmatpush1.msra.mxu0 0.0
    %759 = vmatprep.subr.mxu0 0.0
    %760 = vmatpush1.msra.mxu0 0.0
    %761 = vmatprep.subr.mxu0 0.0
    %762 = vmatpush1.msra.mxu0 0.0
    %763 = vmatprep.subr.mxu0 0.0
    %764 = vmatpush1.msra.mxu0 0.0
    %765 = vmatprep.subr.mxu0 0.0
    %766 = vmatpush1.msra.mxu0 0.0
    %767 = vmatprep.subr.mxu0 0.0
    %768 = vmatpush1.msra.mxu0 0.0
    %769 = vmatprep.subr.mxu0 0.0
    %770 = vmatpush1.msra.mxu0 0.0
    %771 = vmatprep.subr.mxu0 0.0
    %772 = vmatpush1.msra.mxu0 0.0
    %773 = vmatprep.subr.mxu0 0.0
    %774 = vmatpush1.msra.mxu0 0.0
    %775 = vmatprep.subr.mxu0 0.0
    %776 = vmatpush1.msra.mxu0 0.0
    %777 = vmatprep.subr.mxu0 0.0
    %778 = vmatpush1.msra.mxu0 %v62
    %779 = vmatprep.subr.mxu0 0.0
    %780 = vmatpush1.msra.mxu0 %v61
    %781 = vmatprep.subr.mxu0 0.0
    %782 = vmatpush1.msra.mxu0 %v60
    %783 = vmatprep.subr.mxu0 0.0
    %784 = vmatpush1.msra.mxu0 %v59
    %785 = vmatprep.subr.mxu0 0.0
    %786 = vmatpush2.msra.mxu0 0.0
    %787 = vmatprep.subr.mxu0 0.0
    %788 = vmatpush2.msra.mxu0 0.0
    %789 = vmatprep.subr.mxu0 0.0
    %790 = vmatpush2.msra.mxu0 0.0
    %791 = vmatprep.subr.mxu0 0.0
    %792 = vmatpush2.msra.mxu0 0.0
    %793 = vmatprep.subr.mxu0 0.0
    %794 = vmatpush2.msra.mxu0 0.0
    %795 = vmatprep.subr.mxu0 0.0
    %796 = vmatpush2.msra.mxu0 0.0
    %797 = vmatprep.subr.mxu0 0.0
    %798 = vmatpush2.msra.mxu0 0.0
    %799 = vmatprep.subr.mxu0 0.0
    %800 = vmatpush2.msra.mxu0 0.0
    %801 = vmatprep.subr.mxu0 0.0
    %802 = vmatpush2.msra.mxu0 0.0
    %803 = vmatprep.subr.mxu0 0.0
    %804 = vmatpush2.msra.mxu0 0.0
    %805 = vmatprep.subr.mxu0 0.0
    %806 = vmatpush2.msra.mxu0 0.0
    %807 = vmatprep.subr.mxu0 0.0
    %808 = vmatpush2.msra.mxu0 0.0
    %809 = vmatprep.subr.mxu0 0.0
    %810 = vmatpush2.msra.mxu0 0.0
    %811 = vmatprep.subr.mxu0 0.0
    %812 = vmatpush2.msra.mxu0 0.0
    %813 = vmatprep.subr.mxu0 0.0
    %814 = vmatpush2.msra.mxu0 0.0
    %815 = vmatprep.subr.mxu0 0.0
    %816 = vmatpush2.msra.mxu0 0.0
    %817 = vmatprep.mubr.f32.mxu0 0.0
    %818 = vmatmul.mubr.f32.gmra.mxu0 %v73
    %v819 = vpop.f32.mrf.mxu0
    %v820 = vadd.f32 0.0, %v819
    %v821 = vpop.f32.mrf.mxu0
    %822 = vmatprep.mubr.f32.mxu0 0.0
    %823 = vmatmul.mubr.f32.gmra.mxu0 %v76
    %v824 = vpop.f32.mrf.mxu0
    %v825 = vadd.f32 0.0, %v824
    %v826 = vpop.f32.mrf.mxu0
    %827 = vdwg.mxu0
    %828 = vmatprep.subr.mxu0 0.0
    %829 = vmatpush1.msra.mxu0 0.0
    %830 = vmatprep.subr.mxu0 0.0
    %831 = vmatpush1.msra.mxu0 0.0
    %832 = vmatprep.subr.mxu0 0.0
    %833 = vmatpush1.msra.mxu0 0.0
    %834 = vmatprep.subr.mxu0 0.0
    %835 = vmatpush1.msra.mxu0 0.0
    %836 = vmatprep.subr.mxu0 0.0
    %837 = vmatpush1.msra.mxu0 0.0
    %838 = vmatprep.subr.mxu0 0.0
    %839 = vmatpush1.msra.mxu0 0.0
    %840 = vmatprep.subr.mxu0 0.0
    %841 = vmatpush1.msra.mxu0 0.0
    %842 = vmatprep.subr.mxu0 0.0
    %843 = vmatpush1.msra.mxu0 0.0
    %844 = vmatprep.subr.mxu0 0.0
    %845 = vmatpush1.msra.mxu0 0.0
    %846 = vmatprep.subr.mxu0 0.0
    %847 = vmatpush1.msra.mxu0 0.0
    %848 = vmatprep.subr.mxu0 0.0
    %849 = vmatpush1.msra.mxu0 0.0
    %850 = vmatprep.subr.mxu0 0.0
    %851 = vmatpush1.msra.mxu0 0.0
    %852 = vmatprep.subr.mxu0 0.0
    %853 = vmatpush1.msra.mxu0 %v66
    %854 = vmatprep.subr.mxu0 0.0
    %855 = vmatpush1.msra.mxu0 %v65
    %856 = vmatprep.subr.mxu0 0.0
    %857 = vmatpush1.msra.mxu0 %v64
    %858 = vmatprep.subr.mxu0 0.0
    %859 = vmatpush1.msra.mxu0 %v63
    %860 = vmatprep.subr.mxu0 0.0
    %861 = vmatpush2.msra.mxu0 0.0
    %862 = vmatprep.subr.mxu0 0.0
    %863 = vmatpush2.msra.mxu0 0.0
    %864 = vmatprep.subr.mxu0 0.0
    %865 = vmatpush2.msra.mxu0 0.0
    %866 = vmatprep.subr.mxu0 0.0
    %867 = vmatpush2.msra.mxu0 0.0
    %868 = vmatprep.subr.mxu0 0.0
    %869 = vmatpush2.msra.mxu0 0.0
    %870 = vmatprep.subr.mxu0 0.0
    %871 = vmatpush2.msra.mxu0 0.0
    %872 = vmatprep.subr.mxu0 0.0
    %873 = vmatpush2.msra.mxu0 0.0
    %874 = vmatprep.subr.mxu0 0.0
    %875 = vmatpush2.msra.mxu0 0.0
    %876 = vmatprep.subr.mxu0 0.0
    %877 = vmatpush2.msra.mxu0 0.0
    %878 = vmatprep.subr.mxu0 0.0
    %879 = vmatpush2.msra.mxu0 0.0
    %880 = vmatprep.subr.mxu0 0.0
    %881 = vmatpush2.msra.mxu0 0.0
    %882 = vmatprep.subr.mxu0 0.0
    %883 = vmatpush2.msra.mxu0 0.0
    %884 = vmatprep.subr.mxu0 0.0
    %885 = vmatpush2.msra.mxu0 0.0
    %886 = vmatprep.subr.mxu0 0.0
    %887 = vmatpush2.msra.mxu0 0.0
    %888 = vmatprep.subr.mxu0 0.0
    %889 = vmatpush2.msra.mxu0 0.0
    %890 = vmatprep.subr.mxu0 0.0
    %891 = vmatpush2.msra.mxu0 0.0
    %892 = vmatprep.mubr.f32.mxu0 0.0
    %893 = vmatmul.mubr.f32.gmra.mxu0 %v73
    %v894 = vpop.f32.mrf.mxu0
    %v895 = vadd.f32 0.0, %v894
    %v896 = vpop.f32.mrf.mxu0
    %897 = vmatprep.mubr.f32.mxu0 0.0
    %898 = vmatmul.mubr.f32.gmra.mxu0 %v76
    %v899 = vpop.f32.mrf.mxu0
    %v900 = vadd.f32 0.0, %v899
    %v901 = vpop.f32.mrf.mxu0
    %902 = vdwg.mxu0
    %903 = vmatprep.subr.mxu0 0.0
    %904 = vmatpush1.msra.mxu0 0.0
    %905 = vmatprep.subr.mxu0 0.0
    %906 = vmatpush1.msra.mxu0 0.0
    %907 = vmatprep.subr.mxu0 0.0
    %908 = vmatpush1.msra.mxu0 0.0
    %909 = vmatprep.subr.mxu0 0.0
    %910 = vmatpush1.msra.mxu0 0.0
    %911 = vmatprep.subr.mxu0 0.0
    %912 = vmatpush1.msra.mxu0 0.0
    %913 = vmatprep.subr.mxu0 0.0
    %914 = vmatpush1.msra.mxu0 0.0
    %915 = vmatprep.subr.mxu0 0.0
    %916 = vmatpush1.msra.mxu0 0.0
    %917 = vmatprep.subr.mxu0 0.0
    %918 = vmatpush1.msra.mxu0 0.0
    %919 = vmatprep.subr.mxu0 0.0
    %920 = vmatpush1.msra.mxu0 0.0
    %921 = vmatprep.subr.mxu0 0.0
    %922 = vmatpush1.msra.mxu0 0.0
    %923 = vmatprep.subr.mxu0 0.0
    %924 = vmatpush1.msra.mxu0 0.0
    %925 = vmatprep.subr.mxu0 0.0
    %926 = vmatpush1.msra.mxu0 0.0
    %927 = vmatprep.subr.mxu0 0.0
    %928 = vmatpush1.msra.mxu0 %v70
    %929 = vmatprep.subr.mxu0 0.0
    %930 = vmatpush1.msra.mxu0 %v69
    %931 = vmatprep.subr.mxu0 0.0
    %932 = vmatpush1.msra.mxu0 %v68
    %933 = vmatprep.subr.mxu0 0.0
    %934 = vmatpush1.msra.mxu0 %v67
    %935 = vmatprep.subr.mxu0 0.0
    %936 = vmatpush2.msra.mxu0 0.0
    %937 = vmatprep.subr.mxu0 0.0
    %938 = vmatpush2.msra.mxu0 0.0
    %939 = vmatprep.subr.mxu0 0.0
    %940 = vmatpush2.msra.mxu0 0.0
    %941 = vmatprep.subr.mxu0 0.0
    %942 = vmatpush2.msra.mxu0 0.0
    %943 = vmatprep.subr.mxu0 0.0
    %944 = vmatpush2.msra.mxu0 0.0
    %945 = vmatprep.subr.mxu0 0.0
    %946 = vmatpush2.msra.mxu0 0.0
    %947 = vmatprep.subr.mxu0 0.0
    %948 = vmatpush2.msra.mxu0 0.0
    %949 = vmatprep.subr.mxu0 0.0
    %950 = vmatpush2.msra.mxu0 0.0
    %951 = vmatprep.subr.mxu0 0.0
    %952 = vmatpush2.msra.mxu0 0.0
    %953 = vmatprep.subr.mxu0 0.0
    %954 = vmatpush2.msra.mxu0 0.0
    %955 = vmatprep.subr.mxu0 0.0
    %956 = vmatpush2.msra.mxu0 0.0
    %957 = vmatprep.subr.mxu0 0.0
    %958 = vmatpush2.msra.mxu0 0.0
    %959 = vmatprep.subr.mxu0 0.0
    %960 = vmatpush2.msra.mxu0 0.0
    %961 = vmatprep.subr.mxu0 0.0
    %962 = vmatpush2.msra.mxu0 0.0
    %963 = vmatprep.subr.mxu0 0.0
    %964 = vmatpush2.msra.mxu0 0.0
    %965 = vmatprep.subr.mxu0 0.0
    %966 = vmatpush2.msra.mxu0 0.0
    %967 = vmatprep.mubr.f32.mxu0 0.0
    %968 = vmatmul.mubr.f32.gmra.mxu0 %v73
    %v969 = vpop.f32.mrf.mxu0
    %v970 = vadd.f32 0.0, %v969
    %v971 = vpop.f32.mrf.mxu0
    %972 = vmatprep.mubr.f32.mxu0 0.0
    %973 = vmatmul.mubr.f32.gmra.mxu0 %v76
    %v974 = vpop.f32.mrf.mxu0
    %v975 = vadd.f32 0.0, %v974
    %v976 = vpop.f32.mrf.mxu0
    %977 = vdwg.mxu0
    %v978 = vld [vmem:[%s4] sm:$0xff]
    %v979 = vld [vmem:[%s4 + $0x8] sm:$0xff]
    %vm980 = vcmask 64512
    %v982 = vsel %vm980, %v145, 0
    %v985 = vsel %vm980, %v150, 0
    %v988 = vsel %vm980, %v445, 0
    %v991 = vsel %vm980, %v450, 0
    %993 = vmatprep.subr.mxu0 0.0
    %994 = vmatpush1.xpose.msra.mxu0 0.0
    %995 = vmatprep.subr.mxu0 0.0
    %996 = vmatpush1.xpose.msra.mxu0 0.0
    %997 = vmatprep.subr.mxu0 0.0
    %998 = vmatpush1.xpose.msra.mxu0 0.0
    %999 = vmatprep.subr.mxu0 0.0
    %1000 = vmatpush1.xpose.msra.mxu0 0.0
    %1001 = vmatprep.subr.mxu0 0.0
    %1002 = vmatpush1.xpose.msra.mxu0 0.0
    %1003 = vmatprep.subr.mxu0 0.0
    %1004 = vmatpush1.xpose.msra.mxu0 0.0
    %1005 = vmatprep.subr.mxu0 0.0
    %1006 = vmatpush1.xpose.msra.mxu0 0.0
    %1007 = vmatprep.subr.mxu0 0.0
    %1008 = vmatpush1.xpose.msra.mxu0 0.0
    %1009 = vmatprep.subr.mxu0 0.0
    %1010 = vmatpush1.xpose.msra.mxu0 0.0
    %1011 = vmatprep.subr.mxu0 0.0
    %1012 = vmatpush1.xpose.msra.mxu0 0.0
    %1013 = vmatprep.subr.mxu0 0.0
    %1014 = vmatpush1.xpose.msra.mxu0 0.0
    %1015 = vmatprep.subr.mxu0 0.0
    %1016 = vmatpush1.xpose.msra.mxu0 0.0
    %1017 = vmatprep.subr.mxu0 0.0
    %1018 = vmatpush1.xpose.msra.mxu0 0.0
    %1019 = vmatprep.subr.mxu0 0.0
    %1020 = vmatpush1.xpose.msra.mxu0 0.0
    %1021 = vmatprep.subr.mxu0 0.0
    %1022 = vmatpush1.xpose.msra.mxu0 %v991
    %1023 = vmatprep.subr.mxu0 0.0
    %1024 = vmatpush1.xpose.msra.mxu0 %v988
    %1025 = vmatprep.subr.mxu0 0.0
    %1026 = vmatpush2.xpose.msra.mxu0 0.0
    %1027 = vmatprep.subr.mxu0 0.0
    %1028 = vmatpush2.xpose.msra.mxu0 0.0
    %1029 = vmatprep.subr.mxu0 0.0
    %1030 = vmatpush2.xpose.msra.mxu0 0.0
    %1031 = vmatprep.subr.mxu0 0.0
    %1032 = vmatpush2.xpose.msra.mxu0 0.0
    %1033 = vmatprep.subr.mxu0 0.0
    %1034 = vmatpush2.xpose.msra.mxu0 0.0
    %1035 = vmatprep.subr.mxu0 0.0
    %1036 = vmatpush2.xpose.msra.mxu0 0.0
    %1037 = vmatprep.subr.mxu0 0.0
    %1038 = vmatpush2.xpose.msra.mxu0 0.0
    %1039 = vmatprep.subr.mxu0 0.0
    %1040 = vmatpush2.xpose.msra.mxu0 0.0
    %1041 = vmatprep.subr.mxu0 0.0
    %1042 = vmatpush2.xpose.msra.mxu0 0.0
    %1043 = vmatprep.subr.mxu0 0.0
    %1044 = vmatpush2.xpose.msra.mxu0 0.0
    %1045 = vmatprep.subr.mxu0 0.0
    %1046 = vmatpush2.xpose.msra.mxu0 0.0
    %1047 = vmatprep.subr.mxu0 0.0
    %1048 = vmatpush2.xpose.msra.mxu0 0.0
    %1049 = vmatprep.subr.mxu0 0.0
    %1050 = vmatpush2.xpose.msra.mxu0 0.0
    %1051 = vmatprep.subr.mxu0 0.0
    %1052 = vmatpush2.xpose.msra.mxu0 0.0
    %1053 = vmatprep.subr.mxu0 0.0
    %1054 = vmatpush2.xpose.msra.mxu0 0.0
    %1055 = vmatprep.subr.mxu0 0.0
    %1056 = vmatpush2.xpose.msra.mxu0 0.0
    %1057 = vmatprep.mubr.f32.mxu0 0.0
    %1058 = vmatmul.mubr.f32.gmra.mxu0 %v982
    %v1059 = vpop.f32.mrf.mxu0
    %v1060 = vadd.f32 %v978, %v1059
    %v1061 = vpop.f32.mrf.mxu0
    %1062 = vmatprep.mubr.f32.mxu0 0.0
    %1063 = vmatmul.mubr.f32.gmra.mxu0 %v985
    %v1064 = vpop.f32.mrf.mxu0
    %v1065 = vadd.f32 %v979, %v1064
    %v1066 = vpop.f32.mrf.mxu0
    %1067 = vdwg.mxu0
    %v1069 = vsel %vm980, %v220, 0
    %v1072 = vsel %vm980, %v225, 0
    %v1075 = vsel %vm980, %v520, 0
    %v1078 = vsel %vm980, %v525, 0
    %1080 = vmatprep.subr.mxu0 0.0
    %1081 = vmatpush1.xpose.msra.mxu0 0.0
    %1082 = vmatprep.subr.mxu0 0.0
    %1083 = vmatpush1.xpose.msra.mxu0 0.0
    %1084 = vmatprep.subr.mxu0 0.0
    %1085 = vmatpush1.xpose.msra.mxu0 0.0
    %1086 = vmatprep.subr.mxu0 0.0
    %1087 = vmatpush1.xpose.msra.mxu0 0.0
    %1088 = vmatprep.subr.mxu0 0.0
    %1089 = vmatpush1.xpose.msra.mxu0 0.0
    %1090 = vmatprep.subr.mxu0 0.0
    %1091 = vmatpush1.xpose.msra.mxu0 0.0
    %1092 = vmatprep.subr.mxu0 0.0
    %1093 = vmatpush1.xpose.msra.mxu0 0.0
    %1094 = vmatprep.subr.mxu0 0.0
    %1095 = vmatpush1.xpose.msra.mxu0 0.0
    %1096 = vmatprep.subr.mxu0 0.0
    %1097 = vmatpush1.xpose.msra.mxu0 0.0
    %1098 = vmatprep.subr.mxu0 0.0
    %1099 = vmatpush1.xpose.msra.mxu0 0.0
    %1100 = vmatprep.subr.mxu0 0.0
    %1101 = vmatpush1.xpose.msra.mxu0 0.0
    %1102 = vmatprep.subr.mxu0 0.0
    %1103 = vmatpush1.xpose.msra.mxu0 0.0
    %1104 = vmatprep.subr.mxu0 0.0
    %1105 = vmatpush1.xpose.msra.mxu0 0.0
    %1106 = vmatprep.subr.mxu0 0.0
    %1107 = vmatpush1.xpose.msra.mxu0 0.0
    %1108 = vmatprep.subr.mxu0 0.0
    %1109 = vmatpush1.xpose.msra.mxu0 %v1078
    %1110 = vmatprep.subr.mxu0 0.0
    %1111 = vmatpush1.xpose.msra.mxu0 %v1075
    %1112 = vmatprep.subr.mxu0 0.0
    %1113 = vmatpush2.xpose.msra.mxu0 0.0
    %1114 = vmatprep.subr.mxu0 0.0
    %1115 = vmatpush2.xpose.msra.mxu0 0.0
    %1116 = vmatprep.subr.mxu0 0.0
    %1117 = vmatpush2.xpose.msra.mxu0 0.0
    %1118 = vmatprep.subr.mxu0 0.0
    %1119 = vmatpush2.xpose.msra.mxu0 0.0
    %1120 = vmatprep.subr.mxu0 0.0
    %1121 = vmatpush2.xpose.msra.mxu0 0.0
    %1122 = vmatprep.subr.mxu0 0.0
    %1123 = vmatpush2.xpose.msra.mxu0 0.0
    %1124 = vmatprep.subr.mxu0 0.0
    %1125 = vmatpush2.xpose.msra.mxu0 0.0
    %1126 = vmatprep.subr.mxu0 0.0
    %1127 = vmatpush2.xpose.msra.mxu0 0.0
    %1128 = vmatprep.subr.mxu0 0.0
    %1129 = vmatpush2.xpose.msra.mxu0 0.0
    %1130 = vmatprep.subr.mxu0 0.0
    %1131 = vmatpush2.xpose.msra.mxu0 0.0
    %1132 = vmatprep.subr.mxu0 0.0
    %1133 = vmatpush2.xpose.msra.mxu0 0.0
    %1134 = vmatprep.subr.mxu0 0.0
    %1135 = vmatpush2.xpose.msra.mxu0 0.0
    %1136 = vmatprep.subr.mxu0 0.0
    %1137 = vmatpush2.xpose.msra.mxu0 0.0
    %1138 = vmatprep.subr.mxu0 0.0
    %1139 = vmatpush2.xpose.msra.mxu0 0.0
    %1140 = vmatprep.subr.mxu0 0.0
    %1141 = vmatpush2.xpose.msra.mxu0 0.0
    %1142 = vmatprep.subr.mxu0 0.0
    %1143 = vmatpush2.xpose.msra.mxu0 0.0
    %1144 = vmatprep.mubr.f32.mxu0 0.0
    %1145 = vmatmul.mubr.f32.gmra.mxu0 %v1069
    %v1146 = vpop.f32.mrf.mxu0
    %v1147 = vadd.f32 %v978, %v1146
    %v1148 = vpop.f32.mrf.mxu0
    %1149 = vmatprep.mubr.f32.mxu0 0.0
    %1150 = vmatmul.mubr.f32.gmra.mxu0 %v1072
    %v1151 = vpop.f32.mrf.mxu0
    %v1152 = vadd.f32 %v979, %v1151
    %v1153 = vpop.f32.mrf.mxu0
    %1154 = vdwg.mxu0
    %v1156 = vsel %vm980, %v295, 0
    %v1159 = vsel %vm980, %v300, 0
    %v1162 = vsel %vm980, %v595, 0
    %v1165 = vsel %vm980, %v600, 0
    %1167 = vmatprep.subr.mxu0 0.0
    %1168 = vmatpush1.xpose.msra.mxu0 0.0
    %1169 = vmatprep.subr.mxu0 0.0
    %1170 = vmatpush1.xpose.msra.mxu0 0.0
    %1171 = vmatprep.subr.mxu0 0.0
    %1172 = vmatpush1.xpose.msra.mxu0 0.0
    %1173 = vmatprep.subr.mxu0 0.0
    %1174 = vmatpush1.xpose.msra.mxu0 0.0
    %1175 = vmatprep.subr.mxu0 0.0
    %1176 = vmatpush1.xpose.msra.mxu0 0.0
    %1177 = vmatprep.subr.mxu0 0.0
    %1178 = vmatpush1.xpose.msra.mxu0 0.0
    %1179 = vmatprep.subr.mxu0 0.0
    %1180 = vmatpush1.xpose.msra.mxu0 0.0
    %1181 = vmatprep.subr.mxu0 0.0
    %1182 = vmatpush1.xpose.msra.mxu0 0.0
    %1183 = vmatprep.subr.mxu0 0.0
    %1184 = vmatpush1.xpose.msra.mxu0 0.0
    %1185 = vmatprep.subr.mxu0 0.0
    %1186 = vmatpush1.xpose.msra.mxu0 0.0
    %1187 = vmatprep.subr.mxu0 0.0
    %1188 = vmatpush1.xpose.msra.mxu0 0.0
    %1189 = vmatprep.subr.mxu0 0.0
    %1190 = vmatpush1.xpose.msra.mxu0 0.0
    %1191 = vmatprep.subr.mxu0 0.0
    %1192 = vmatpush1.xpose.msra.mxu0 0.0
    %1193 = vmatprep.subr.mxu0 0.0
    %1194 = vmatpush1.xpose.msra.mxu0 0.0
    %1195 = vmatprep.subr.mxu0 0.0
    %1196 = vmatpush1.xpose.msra.mxu0 %v1165
    %1197 = vmatprep.subr.mxu0 0.0
    %1198 = vmatpush1.xpose.msra.mxu0 %v1162
    %1199 = vmatprep.subr.mxu0 0.0
    %1200 = vmatpush2.xpose.msra.mxu0 0.0
    %1201 = vmatprep.subr.mxu0 0.0
    %1202 = vmatpush2.xpose.msra.mxu0 0.0
    %1203 = vmatprep.subr.mxu0 0.0
    %1204 = vmatpush2.xpose.msra.mxu0 0.0
    %1205 = vmatprep.subr.mxu0 0.0
    %1206 = vmatpush2.xpose.msra.mxu0 0.0
    %1207 = vmatprep.subr.mxu0 0.0
    %1208 = vmatpush2.xpose.msra.mxu0 0.0
    %1209 = vmatprep.subr.mxu0 0.0
    %1210 = vmatpush2.xpose.msra.mxu0 0.0
    %1211 = vmatprep.subr.mxu0 0.0
    %1212 = vmatpush2.xpose.msra.mxu0 0.0
    %1213 = vmatprep.subr.mxu0 0.0
    %1214 = vmatpush2.xpose.msra.mxu0 0.0
    %1215 = vmatprep.subr.mxu0 0.0
    %1216 = vmatpush2.xpose.msra.mxu0 0.0
    %1217 = vmatprep.subr.mxu0 0.0
    %1218 = vmatpush2.xpose.msra.mxu0 0.0
    %1219 = vmatprep.subr.mxu0 0.0
    %1220 = vmatpush2.xpose.msra.mxu0 0.0
    %1221 = vmatprep.subr.mxu0 0.0
    %1222 = vmatpush2.xpose.msra.mxu0 0.0
    %1223 = vmatprep.subr.mxu0 0.0
    %1224 = vmatpush2.xpose.msra.mxu0 0.0
    %1225 = vmatprep.subr.mxu0 0.0
    %1226 = vmatpush2.xpose.msra.mxu0 0.0
    %1227 = vmatprep.subr.mxu0 0.0
    %1228 = vmatpush2.xpose.msra.mxu0 0.0
    %1229 = vmatprep.subr.mxu0 0.0
    %1230 = vmatpush2.xpose.msra.mxu0 0.0
    %1231 = vmatprep.mubr.f32.mxu0 0.0
    %1232 = vmatmul.mubr.f32.gmra.mxu0 %v1156
    %v1233 = vpop.f32.mrf.mxu0
    %v1234 = vadd.f32 %v978, %v1233
    %v1235 = vpop.f32.mrf.mxu0
    %1236 = vmatprep.mubr.f32.mxu0 0.0
    %1237 = vmatmul.mubr.f32.gmra.mxu0 %v1159
    %v1238 = vpop.f32.mrf.mxu0
    %v1239 = vadd.f32 %v979, %v1238
    %v1240 = vpop.f32.mrf.mxu0
    %1241 = vdwg.mxu0
    %v1243 = vsel %vm980, %v370, 0
    %v1246 = vsel %vm980, %v375, 0
    %v1249 = vsel %vm980, %v670, 0
    %v1252 = vsel %vm980, %v675, 0
    %1254 = vmatprep.subr.mxu0 0.0
    %1255 = vmatpush1.xpose.msra.mxu0 0.0
    %1256 = vmatprep.subr.mxu0 0.0
    %1257 = vmatpush1.xpose.msra.mxu0 0.0
    %1258 = vmatprep.subr.mxu0 0.0
    %1259 = vmatpush1.xpose.msra.mxu0 0.0
    %1260 = vmatprep.subr.mxu0 0.0
    %1261 = vmatpush1.xpose.msra.mxu0 0.0
    %1262 = vmatprep.subr.mxu0 0.0
    %1263 = vmatpush1.xpose.msra.mxu0 0.0
    %1264 = vmatprep.subr.mxu0 0.0
    %1265 = vmatpush1.xpose.msra.mxu0 0.0
    %1266 = vmatprep.subr.mxu0 0.0
    %1267 = vmatpush1.xpose.msra.mxu0 0.0
    %1268 = vmatprep.subr.mxu0 0.0
    %1269 = vmatpush1.xpose.msra.mxu0 0.0
    %1270 = vmatprep.subr.mxu0 0.0
    %1271 = vmatpush1.xpose.msra.mxu0 0.0
    %1272 = vmatprep.subr.mxu0 0.0
    %1273 = vmatpush1.xpose.msra.mxu0 0.0
    %1274 = vmatprep.subr.mxu0 0.0
    %1275 = vmatpush1.xpose.msra.mxu0 0.0
    %1276 = vmatprep.subr.mxu0 0.0
    %1277 = vmatpush1.xpose.msra.mxu0 0.0
    %1278 = vmatprep.subr.mxu0 0.0
    %1279 = vmatpush1.xpose.msra.mxu0 0.0
    %1280 = vmatprep.subr.mxu0 0.0
    %1281 = vmatpush1.xpose.msra.mxu0 0.0
    %1282 = vmatprep.subr.mxu0 0.0
    %1283 = vmatpush1.xpose.msra.mxu0 %v1252
    %1284 = vmatprep.subr.mxu0 0.0
    %1285 = vmatpush1.xpose.msra.mxu0 %v1249
    %1286 = vmatprep.subr.mxu0 0.0
    %1287 = vmatpush2.xpose.msra.mxu0 0.0
    %1288 = vmatprep.subr.mxu0 0.0
    %1289 = vmatpush2.xpose.msra.mxu0 0.0
    %1290 = vmatprep.subr.mxu0 0.0
    %1291 = vmatpush2.xpose.msra.mxu0 0.0
    %1292 = vmatprep.subr.mxu0 0.0
    %1293 = vmatpush2.xpose.msra.mxu0 0.0
    %1294 = vmatprep.subr.mxu0 0.0
    %1295 = vmatpush2.xpose.msra.mxu0 0.0
    %1296 = vmatprep.subr.mxu0 0.0
    %1297 = vmatpush2.xpose.msra.mxu0 0.0
    %1298 = vmatprep.subr.mxu0 0.0
    %1299 = vmatpush2.xpose.msra.mxu0 0.0
    %1300 = vmatprep.subr.mxu0 0.0
    %1301 = vmatpush2.xpose.msra.mxu0 0.0
    %1302 = vmatprep.subr.mxu0 0.0
    %1303 = vmatpush2.xpose.msra.mxu0 0.0
    %1304 = vmatprep.subr.mxu0 0.0
    %1305 = vmatpush2.xpose.msra.mxu0 0.0
    %1306 = vmatprep.subr.mxu0 0.0
    %1307 = vmatpush2.xpose.msra.mxu0 0.0
    %1308 = vmatprep.subr.mxu0 0.0
    %1309 = vmatpush2.xpose.msra.mxu0 0.0
    %1310 = vmatprep.subr.mxu0 0.0
    %1311 = vmatpush2.xpose.msra.mxu0 0.0
    %1312 = vmatprep.subr.mxu0 0.0
    %1313 = vmatpush2.xpose.msra.mxu0 0.0
    %1314 = vmatprep.subr.mxu0 0.0
    %1315 = vmatpush2.xpose.msra.mxu0 0.0
    %1316 = vmatprep.subr.mxu0 0.0
    %1317 = vmatpush2.xpose.msra.mxu0 0.0
    %1318 = vmatprep.mubr.f32.mxu0 0.0
    %1319 = vmatmul.mubr.f32.gmra.mxu0 %v1243
    %v1320 = vpop.f32.mrf.mxu0
    %v1321 = vadd.f32 %v978, %v1320
    %v1322 = vpop.f32.mrf.mxu0
    %1323 = vmatprep.mubr.f32.mxu0 0.0
    %1324 = vmatmul.mubr.f32.gmra.mxu0 %v1246
    %v1325 = vpop.f32.mrf.mxu0
    %v1326 = vadd.f32 %v979, %v1325
    %v1327 = vpop.f32.mrf.mxu0
    %1328 = vdwg.mxu0
    %vm1329 = vcmask 130048
    %v1330 = vsel %vm1329, %v1060, -inf
    %1331 = vmax.xlane.f32.xlu0 %v1330
    %v1332 = vpop.xlane.xlu0 %1331
    %v1333 = vsel %vm1329, %v1065, -inf
    %1334 = vmax.xlane.f32.xlu0 %v1333
    %v1335 = vpop.xlane.xlu0 %1334
    %v1336 = vsel %vm1329, %v1147, -inf
    %1337 = vmax.xlane.f32.xlu0 %v1336
    %v1338 = vpop.xlane.xlu0 %1337
    %v1339 = vsel %vm1329, %v1152, -inf
    %1340 = vmax.xlane.f32.xlu0 %v1339
    %v1341 = vpop.xlane.xlu0 %1340
    %v1342 = vsel %vm1329, %v1234, -inf
    %1343 = vmax.xlane.f32.xlu0 %v1342
    %v1344 = vpop.xlane.xlu0 %1343
    %v1345 = vsel %vm1329, %v1239, -inf
    %1346 = vmax.xlane.f32.xlu0 %v1345
    %v1347 = vpop.xlane.xlu0 %1346
    %v1348 = vsel %vm1329, %v1321, -inf
    %1349 = vmax.xlane.f32.xlu0 %v1348
    %v1350 = vpop.xlane.xlu0 %1349
    %v1351 = vsel %vm1329, %v1326, -inf
    %1352 = vmax.xlane.f32.xlu0 %v1351
    %v1353 = vpop.xlane.xlu0 %1352
    %v1354 = vsub.f32 %v1060, %v1332
    %v1355 = vsub.f32 %v1065, %v1335
    %v1356 = vsub.f32 %v1147, %v1338
    %v1357 = vsub.f32 %v1152, %v1341
    %v1358 = vsub.f32 %v1234, %v1344
    %v1359 = vsub.f32 %v1239, %v1347
    %v1360 = vsub.f32 %v1321, %v1350
    %v1361 = vsub.f32 %v1326, %v1353
    %v1362 = vmul.f32 %v1354, 1.442695
    %v1363 = vpow.pop %v1362
    %v1364 = vmul.f32 %v1355, 1.442695
    %v1365 = vpow.pop %v1364
    %v1366 = vmul.f32 %v1356, 1.442695
    %v1367 = vpow.pop %v1366
    %v1368 = vmul.f32 %v1357, 1.442695
    %v1369 = vpow.pop %v1368
    %v1370 = vmul.f32 %v1358, 1.442695
    %v1371 = vpow.pop %v1370
    %v1372 = vmul.f32 %v1359, 1.442695
    %v1373 = vpow.pop %v1372
    %v1374 = vmul.f32 %v1360, 1.442695
    %v1375 = vpow.pop %v1374
    %v1376 = vmul.f32 %v1361, 1.442695
    %v1377 = vpow.pop %v1376
    %v1378 = vsel %vm1329, %v1363, 0.0
    %1379 = vadd.xlane.f32.xlu0 %v1378
    %v1380 = vpop.xlane.xlu0 %1379
    %v1381 = vsel %vm1329, %v1365, 0.0
    %1382 = vadd.xlane.f32.xlu0 %v1381
    %v1383 = vpop.xlane.xlu0 %1382
    %v1384 = vsel %vm1329, %v1367, 0.0
    %1385 = vadd.xlane.f32.xlu0 %v1384
    %v1386 = vpop.xlane.xlu0 %1385
    %v1387 = vsel %vm1329, %v1369, 0.0
    %1388 = vadd.xlane.f32.xlu0 %v1387
    %v1389 = vpop.xlane.xlu0 %1388
    %v1390 = vsel %vm1329, %v1371, 0.0
    %1391 = vadd.xlane.f32.xlu0 %v1390
    %v1392 = vpop.xlane.xlu0 %1391
    %v1393 = vsel %vm1329, %v1373, 0.0
    %1394 = vadd.xlane.f32.xlu0 %v1393
    %v1395 = vpop.xlane.xlu0 %1394
    %v1396 = vsel %vm1329, %v1375, 0.0
    %1397 = vadd.xlane.f32.xlu0 %v1396
    %v1398 = vpop.xlane.xlu0 %1397
    %v1399 = vsel %vm1329, %v1377, 0.0
    %1400 = vadd.xlane.f32.xlu0 %v1399
    %v1401 = vpop.xlane.xlu0 %1400
    %v1402 = vrcp.pop %v1380
    %v1403 = vrcp.pop %v1383
    %v1404 = vrcp.pop %v1386
    %v1405 = vrcp.pop %v1389
    %v1406 = vrcp.pop %v1392
    %v1407 = vrcp.pop %v1395
    %v1408 = vrcp.pop %v1398
    %v1409 = vrcp.pop %v1401
    %v1410 = vmul.f32 %v1380, %v1402
    %v1411 = vmul.f32 %v1383, %v1403
    %v1412 = vmul.f32 %v1386, %v1404
    %v1413 = vmul.f32 %v1389, %v1405
    %v1414 = vmul.f32 %v1392, %v1406
    %v1415 = vmul.f32 %v1395, %v1407
    %v1416 = vmul.f32 %v1398, %v1408
    %v1417 = vmul.f32 %v1401, %v1409
    %v1418 = vsub.f32 2.0, %v1410
    %v1419 = vsub.f32 2.0, %v1411
    %v1420 = vsub.f32 2.0, %v1412
    %v1421 = vsub.f32 2.0, %v1413
    %v1422 = vsub.f32 2.0, %v1414
    %v1423 = vsub.f32 2.0, %v1415
    %v1424 = vsub.f32 2.0, %v1416
    %v1425 = vsub.f32 2.0, %v1417
    %v1426 = vmul.f32 %v1402, %v1418
    %v1427 = vmul.f32 %v1403, %v1419
    %v1428 = vmul.f32 %v1404, %v1420
    %v1429 = vmul.f32 %v1405, %v1421
    %v1430 = vmul.f32 %v1406, %v1422
    %v1431 = vmul.f32 %v1407, %v1423
    %v1432 = vmul.f32 %v1408, %v1424
    %v1433 = vmul.f32 %v1409, %v1425
    %v1434 = vmul.f32 %v1363, %v1426
    %v1435 = vmul.f32 %v1365, %v1427
    %v1436 = vmul.f32 %v1367, %v1428
    %v1437 = vmul.f32 %v1369, %v1429
    %v1438 = vmul.f32 %v1371, %v1430
    %v1439 = vmul.f32 %v1373, %v1431
    %v1440 = vmul.f32 %v1375, %v1432
    %v1441 = vmul.f32 %v1377, %v1433
    %v1443 = vsel %vm1329, %v1434, 0
    %v1446 = vsel %vm1329, %v1435, 0
    %1448 = vmatprep.subr.mxu0 0.0
    %1449 = vmatpush1.msra.mxu0 0.0
    %1450 = vmatprep.subr.mxu0 0.0
    %1451 = vmatpush1.msra.mxu0 0.0
    %1452 = vmatprep.subr.mxu0 0.0
    %1453 = vmatpush1.msra.mxu0 0.0
    %1454 = vmatprep.subr.mxu0 0.0
    %1455 = vmatpush1.msra.mxu0 0.0
    %1456 = vmatprep.subr.mxu0 0.0
    %1457 = vmatpush1.msra.mxu0 0.0
    %1458 = vmatprep.subr.mxu0 0.0
    %1459 = vmatpush1.msra.mxu0 0.0
    %1460 = vmatprep.subr.mxu0 0.0
    %1461 = vmatpush1.msra.mxu0 0.0
    %1462 = vmatprep.subr.mxu0 0.0
    %1463 = vmatpush1.msra.mxu0 0.0
    %1464 = vmatprep.subr.mxu0 0.0
    %1465 = vmatpush1.msra.mxu0 0.0
    %1466 = vmatprep.subr.mxu0 0.0
    %1467 = vmatpush1.msra.mxu0 0.0
    %1468 = vmatprep.subr.mxu0 0.0
    %1469 = vmatpush1.msra.mxu0 0.0
    %1470 = vmatprep.subr.mxu0 0.0
    %1471 = vmatpush1.msra.mxu0 0.0
    %1472 = vmatprep.subr.mxu0 0.0
    %1473 = vmatpush1.msra.mxu0 0.0
    %1474 = vmatprep.subr.mxu0 0.0
    %1475 = vmatpush1.msra.mxu0 0.0
    %1476 = vmatprep.subr.mxu0 0.0
    %1477 = vmatpush1.msra.mxu0 %v750
    %1478 = vmatprep.subr.mxu0 0.0
    %1479 = vmatpush1.msra.mxu0 %v745
    %1480 = vmatprep.subr.mxu0 0.0
    %1481 = vmatpush2.msra.mxu0 0.0
    %1482 = vmatprep.subr.mxu0 0.0
    %1483 = vmatpush2.msra.mxu0 0.0
    %1484 = vmatprep.subr.mxu0 0.0
    %1485 = vmatpush2.msra.mxu0 0.0
    %1486 = vmatprep.subr.mxu0 0.0
    %1487 = vmatpush2.msra.mxu0 0.0
    %1488 = vmatprep.subr.mxu0 0.0
    %1489 = vmatpush2.msra.mxu0 0.0
    %1490 = vmatprep.subr.mxu0 0.0
    %1491 = vmatpush2.msra.mxu0 0.0
    %1492 = vmatprep.subr.mxu0 0.0
    %1493 = vmatpush2.msra.mxu0 0.0
    %1494 = vmatprep.subr.mxu0 0.0
    %1495 = vmatpush2.msra.mxu0 0.0
    %1496 = vmatprep.subr.mxu0 0.0
    %1497 = vmatpush2.msra.mxu0 0.0
    %1498 = vmatprep.subr.mxu0 0.0
    %1499 = vmatpush2.msra.mxu0 0.0
    %1500 = vmatprep.subr.mxu0 0.0
    %1501 = vmatpush2.msra.mxu0 0.0
    %1502 = vmatprep.subr.mxu0 0.0
    %1503 = vmatpush2.msra.mxu0 0.0
    %1504 = vmatprep.subr.mxu0 0.0
    %1505 = vmatpush2.msra.mxu0 0.0
    %1506 = vmatprep.subr.mxu0 0.0
    %1507 = vmatpush2.msra.mxu0 0.0
    %1508 = vmatprep.subr.mxu0 0.0
    %1509 = vmatpush2.msra.mxu0 0.0
    %1510 = vmatprep.subr.mxu0 0.0
    %1511 = vmatpush2.msra.mxu0 0.0
    %1512 = vmatprep.mubr.f32.mxu0 0.0
    %1513 = vmatmul.mubr.f32.gmra.mxu0 %v1443
    %v1514 = vpop.f32.mrf.mxu0
    %v1515 = vadd.f32 0.0, %v1514
    %v1516 = vpop.f32.mrf.mxu0
    %1517 = vmatprep.mubr.f32.mxu0 0.0
    %1518 = vmatmul.mubr.f32.gmra.mxu0 %v1446
    %v1519 = vpop.f32.mrf.mxu0
    %v1520 = vadd.f32 0.0, %v1519
    %v1521 = vpop.f32.mrf.mxu0
    %1522 = vdwg.mxu0
    %v1524 = vsel %vm1329, %v1436, 0
    %v1527 = vsel %vm1329, %v1437, 0
    %1529 = vmatprep.subr.mxu0 0.0
    %1530 = vmatpush1.msra.mxu0 0.0
    %1531 = vmatprep.subr.mxu0 0.0
    %1532 = vmatpush1.msra.mxu0 0.0
    %1533 = vmatprep.subr.mxu0 0.0
    %1534 = vmatpush1.msra.mxu0 0.0
    %1535 = vmatprep.subr.mxu0 0.0
    %1536 = vmatpush1.msra.mxu0 0.0
    %1537 = vmatprep.subr.mxu0 0.0
    %1538 = vmatpush1.msra.mxu0 0.0
    %1539 = vmatprep.subr.mxu0 0.0
    %1540 = vmatpush1.msra.mxu0 0.0
    %1541 = vmatprep.subr.mxu0 0.0
    %1542 = vmatpush1.msra.mxu0 0.0
    %1543 = vmatprep.subr.mxu0 0.0
    %1544 = vmatpush1.msra.mxu0 0.0
    %1545 = vmatprep.subr.mxu0 0.0
    %1546 = vmatpush1.msra.mxu0 0.0
    %1547 = vmatprep.subr.mxu0 0.0
    %1548 = vmatpush1.msra.mxu0 0.0
    %1549 = vmatprep.subr.mxu0 0.0
    %1550 = vmatpush1.msra.mxu0 0.0
    %1551 = vmatprep.subr.mxu0 0.0
    %1552 = vmatpush1.msra.mxu0 0.0
    %1553 = vmatprep.subr.mxu0 0.0
    %1554 = vmatpush1.msra.mxu0 0.0
    %1555 = vmatprep.subr.mxu0 0.0
    %1556 = vmatpush1.msra.mxu0 0.0
    %1557 = vmatprep.subr.mxu0 0.0
    %1558 = vmatpush1.msra.mxu0 %v825
    %1559 = vmatprep.subr.mxu0 0.0
    %1560 = vmatpush1.msra.mxu0 %v820
    %1561 = vmatprep.subr.mxu0 0.0
    %1562 = vmatpush2.msra.mxu0 0.0
    %1563 = vmatprep.subr.mxu0 0.0
    %1564 = vmatpush2.msra.mxu0 0.0
    %1565 = vmatprep.subr.mxu0 0.0
    %1566 = vmatpush2.msra.mxu0 0.0
    %1567 = vmatprep.subr.mxu0 0.0
    %1568 = vmatpush2.msra.mxu0 0.0
    %1569 = vmatprep.subr.mxu0 0.0
    %1570 = vmatpush2.msra.mxu0 0.0
    %1571 = vmatprep.subr.mxu0 0.0
    %1572 = vmatpush2.msra.mxu0 0.0
    %1573 = vmatprep.subr.mxu0 0.0
    %1574 = vmatpush2.msra.mxu0 0.0
    %1575 = vmatprep.subr.mxu0 0.0
    %1576 = vmatpush2.msra.mxu0 0.0
    %1577 = vmatprep.subr.mxu0 0.0
    %1578 = vmatpush2.msra.mxu0 0.0
    %1579 = vmatprep.subr.mxu0 0.0
    %1580 = vmatpush2.msra.mxu0 0.0
    %1581 = vmatprep.subr.mxu0 0.0
    %1582 = vmatpush2.msra.mxu0 0.0
    %1583 = vmatprep.subr.mxu0 0.0
    %1584 = vmatpush2.msra.mxu0 0.0
    %1585 = vmatprep.subr.mxu0 0.0
    %1586 = vmatpush2.msra.mxu0 0.0
    %1587 = vmatprep.subr.mxu0 0.0
    %1588 = vmatpush2.msra.mxu0 0.0
    %1589 = vmatprep.subr.mxu0 0.0
    %1590 = vmatpush2.msra.mxu0 0.0
    %1591 = vmatprep.subr.mxu0 0.0
    %1592 = vmatpush2.msra.mxu0 0.0
    %1593 = vmatprep.mubr.f32.mxu0 0.0
    %1594 = vmatmul.mubr.f32.gmra.mxu0 %v1524
    %v1595 = vpop.f32.mrf.mxu0
    %v1596 = vadd.f32 0.0, %v1595
    %v1597 = vpop.f32.mrf.mxu0
    %1598 = vmatprep.mubr.f32.mxu0 0.0
    %1599 = vmatmul.mubr.f32.gmra.mxu0 %v1527
    %v1600 = vpop.f32.mrf.mxu0
    %v1601 = vadd.f32 0.0, %v1600
    %v1602 = vpop.f32.mrf.mxu0
    %1603 = vdwg.mxu0
    %v1605 = vsel %vm1329, %v1438, 0
    %v1608 = vsel %vm1329, %v1439, 0
    %1610 = vmatprep.subr.mxu0 0.0
    %1611 = vmatpush1.msra.mxu0 0.0
    %1612 = vmatprep.subr.mxu0 0.0
    %1613 = vmatpush1.msra.mxu0 0.0
    %1614 = vmatprep.subr.mxu0 0.0
    %1615 = vmatpush1.msra.mxu0 0.0
    %1616 = vmatprep.subr.mxu0 0.0
    %1617 = vmatpush1.msra.mxu0 0.0
    %1618 = vmatprep.subr.mxu0 0.0
    %1619 = vmatpush1.msra.mxu0 0.0
    %1620 = vmatprep.subr.mxu0 0.0
    %1621 = vmatpush1.msra.mxu0 0.0
    %1622 = vmatprep.subr.mxu0 0.0
    %1623 = vmatpush1.msra.mxu0 0.0
    %1624 = vmatprep.subr.mxu0 0.0
    %1625 = vmatpush1.msra.mxu0 0.0
    %1626 = vmatprep.subr.mxu0 0.0
    %1627 = vmatpush1.msra.mxu0 0.0
    %1628 = vmatprep.subr.mxu0 0.0
    %1629 = vmatpush1.msra.mxu0 0.0
    %1630 = vmatprep.subr.mxu0 0.0
    %1631 = vmatpush1.msra.mxu0 0.0
    %1632 = vmatprep.subr.mxu0 0.0
    %1633 = vmatpush1.msra.mxu0 0.0
    %1634 = vmatprep.subr.mxu0 0.0
    %1635 = vmatpush1.msra.mxu0 0.0
    %1636 = vmatprep.subr.mxu0 0.0
    %1637 = vmatpush1.msra.mxu0 0.0
    %1638 = vmatprep.subr.mxu0 0.0
    %1639 = vmatpush1.msra.mxu0 %v900
    %1640 = vmatprep.subr.mxu0 0.0
    %1641 = vmatpush1.msra.mxu0 %v895
    %1642 = vmatprep.subr.mxu0 0.0
    %1643 = vmatpush2.msra.mxu0 0.0
    %1644 = vmatprep.subr.mxu0 0.0
    %1645 = vmatpush2.msra.mxu0 0.0
    %1646 = vmatprep.subr.mxu0 0.0
    %1647 = vmatpush2.msra.mxu0 0.0
    %1648 = vmatprep.subr.mxu0 0.0
    %1649 = vmatpush2.msra.mxu0 0.0
    %1650 = vmatprep.subr.mxu0 0.0
    %1651 = vmatpush2.msra.mxu0 0.0
    %1652 = vmatprep.subr.mxu0 0.0
    %1653 = vmatpush2.msra.mxu0 0.0
    %1654 = vmatprep.subr.mxu0 0.0
    %1655 = vmatpush2.msra.mxu0 0.0
    %1656 = vmatprep.subr.mxu0 0.0
    %1657 = vmatpush2.msra.mxu0 0.0
    %1658 = vmatprep.subr.mxu0 0.0
    %1659 = vmatpush2.msra.mxu0 0.0
    %1660 = vmatprep.subr.mxu0 0.0
    %1661 = vmatpush2.msra.mxu0 0.0
    %1662 = vmatprep.subr.mxu0 0.0
    %1663 = vmatpush2.msra.mxu0 0.0
    %1664 = vmatprep.subr.mxu0 0.0
    %1665 = vmatpush2.msra.mxu0 0.0
    %1666 = vmatprep.subr.mxu0 0.0
    %1667 = vmatpush2.msra.mxu0 0.0
    %1668 = vmatprep.subr.mxu0 0.0
    %1669 = vmatpush2.msra.mxu0 0.0
    %1670 = vmatprep.subr.mxu0 0.0
    %1671 = vmatpush2.msra.mxu0 0.0
    %1672 = vmatprep.subr.mxu0 0.0
    %1673 = vmatpush2.msra.mxu0 0.0
    %1674 = vmatprep.mubr.f32.mxu0 0.0
    %1675 = vmatmul.mubr.f32.gmra.mxu0 %v1605
    %v1676 = vpop.f32.mrf.mxu0
    %v1677 = vadd.f32 0.0, %v1676
    %v1678 = vpop.f32.mrf.mxu0
    %1679 = vmatprep.mubr.f32.mxu0 0.0
    %1680 = vmatmul.mubr.f32.gmra.mxu0 %v1608
    %v1681 = vpop.f32.mrf.mxu0
    %v1682 = vadd.f32 0.0, %v1681
    %v1683 = vpop.f32.mrf.mxu0
    %1684 = vdwg.mxu0
    %v1686 = vsel %vm1329, %v1440, 0
    %v1689 = vsel %vm1329, %v1441, 0
    %1691 = vmatprep.subr.mxu0 0.0
    %1692 = vmatpush1.msra.mxu0 0.0
    %1693 = vmatprep.subr.mxu0 0.0
    %1694 = vmatpush1.msra.mxu0 0.0
    %1695 = vmatprep.subr.mxu0 0.0
    %1696 = vmatpush1.msra.mxu0 0.0
    %1697 = vmatprep.subr.mxu0 0.0
    %1698 = vmatpush1.msra.mxu0 0.0
    %1699 = vmatprep.subr.mxu0 0.0
    %1700 = vmatpush1.msra.mxu0 0.0
    %1701 = vmatprep.subr.mxu0 0.0
    %1702 = vmatpush1.msra.mxu0 0.0
    %1703 = vmatprep.subr.mxu0 0.0
    %1704 = vmatpush1.msra.mxu0 0.0
    %1705 = vmatprep.subr.mxu0 0.0
    %1706 = vmatpush1.msra.mxu0 0.0
    %1707 = vmatprep.subr.mxu0 0.0
    %1708 = vmatpush1.msra.mxu0 0.0
    %1709 = vmatprep.subr.mxu0 0.0
    %1710 = vmatpush1.msra.mxu0 0.0
    %1711 = vmatprep.subr.mxu0 0.0
    %1712 = vmatpush1.msra.mxu0 0.0
    %1713 = vmatprep.subr.mxu0 0.0
    %1714 = vmatpush1.msra.mxu0 0.0
    %1715 = vmatprep.subr.mxu0 0.0
    %1716 = vmatpush1.msra.mxu0 0.0
    %1717 = vmatprep.subr.mxu0 0.0
    %1718 = vmatpush1.msra.mxu0 0.0
    %1719 = vmatprep.subr.mxu0 0.0
    %1720 = vmatpush1.msra.mxu0 %v975
    %1721 = vmatprep.subr.mxu0 0.0
    %1722 = vmatpush1.msra.mxu0 %v970
    %1723 = vmatprep.subr.mxu0 0.0
    %1724 = vmatpush2.msra.mxu0 0.0
    %1725 = vmatprep.subr.mxu0 0.0
    %1726 = vmatpush2.msra.mxu0 0.0
    %1727 = vmatprep.subr.mxu0 0.0
    %1728 = vmatpush2.msra.mxu0 0.0
    %1729 = vmatprep.subr.mxu0 0.0
    %1730 = vmatpush2.msra.mxu0 0.0
    %1731 = vmatprep.subr.mxu0 0.0
    %1732 = vmatpush2.msra.mxu0 0.0
    %1733 = vmatprep.subr.mxu0 0.0
    %1734 = vmatpush2.msra.mxu0 0.0
    %1735 = vmatprep.subr.mxu0 0.0
    %1736 = vmatpush2.msra.mxu0 0.0
    %1737 = vmatprep.subr.mxu0 0.0
    %1738 = vmatpush2.msra.mxu0 0.0
    %1739 = vmatprep.subr.mxu0 0.0
    %1740 = vmatpush2.msra.mxu0 0.0
    %1741 = vmatprep.subr.mxu0 0.0
    %1742 = vmatpush2.msra.mxu0 0.0
    %1743 = vmatprep.subr.mxu0 0.0
    %1744 = vmatpush2.msra.mxu0 0.0
    %1745 = vmatprep.subr.mxu0 0.0
    %1746 = vmatpush2.msra.mxu0 0.0
    %1747 = vmatprep.subr.mxu0 0.0
    %1748 = vmatpush2.msra.mxu0 0.0
    %1749 = vmatprep.subr.mxu0 0.0
    %1750 = vmatpush2.msra.mxu0 0.0
    %1751 = vmatprep.subr.mxu0 0.0
    %1752 = vmatpush2.msra.mxu0 0.0
    %1753 = vmatprep.subr.mxu0 0.0
    %1754 = vmatpush2.msra.mxu0 0.0
    %1755 = vmatprep.mubr.f32.mxu0 0.0
    %1756 = vmatmul.mubr.f32.gmra.mxu0 %v1686
    %v1757 = vpop.f32.mrf.mxu0
    %v1758 = vadd.f32 0.0, %v1757
    %v1759 = vpop.f32.mrf.mxu0
    %1760 = vmatprep.mubr.f32.mxu0 0.0
    %1761 = vmatmul.mubr.f32.gmra.mxu0 %v1689
    %v1762 = vpop.f32.mrf.mxu0
    %v1763 = vadd.f32 0.0, %v1762
    %v1764 = vpop.f32.mrf.mxu0
    %1765 = vdwg.mxu0
    %v1766 = vld [vmem:[%s2] sm:$0xff]
    %v1767 = vld [vmem:[%s2 + $0x8] sm:$0xff]
    %v1768 = vld [vmem:[%s2 + $0x10] sm:$0xff]
    %v1769 = vld [vmem:[%s2 + $0x18] sm:$0xff]
    %v1771 = vsel %vm980, %v1515, 0
    %v1774 = vsel %vm980, %v1520, 0
    %1776 = vmatprep.subr.mxu0 0.0
    %1777 = vmatpush1.msra.mxu0 0.0
    %1778 = vmatprep.subr.mxu0 0.0
    %1779 = vmatpush1.msra.mxu0 0.0
    %1780 = vmatprep.subr.mxu0 0.0
    %1781 = vmatpush1.msra.mxu0 0.0
    %1782 = vmatprep.subr.mxu0 0.0
    %1783 = vmatpush1.msra.mxu0 0.0
    %1784 = vmatprep.subr.mxu0 0.0
    %1785 = vmatpush1.msra.mxu0 0.0
    %1786 = vmatprep.subr.mxu0 0.0
    %1787 = vmatpush1.msra.mxu0 0.0
    %1788 = vmatprep.subr.mxu0 0.0
    %1789 = vmatpush1.msra.mxu0 0.0
    %1790 = vmatprep.subr.mxu0 0.0
    %1791 = vmatpush1.msra.mxu0 0.0
    %1792 = vmatprep.subr.mxu0 0.0
    %1793 = vmatpush1.msra.mxu0 0.0
    %1794 = vmatprep.subr.mxu0 0.0
    %1795 = vmatpush1.msra.mxu0 0.0
    %1796 = vmatprep.subr.mxu0 0.0
    %1797 = vmatpush1.msra.mxu0 0.0
    %1798 = vmatprep.subr.mxu0 0.0
    %1799 = vmatpush1.msra.mxu0 0.0
    %1800 = vmatprep.subr.mxu0 0.0
    %1801 = vmatpush1.msra.mxu0 0.0
    %1802 = vmatprep.subr.mxu0 0.0
    %1803 = vmatpush1.msra.mxu0 0.0
    %1804 = vmatprep.subr.mxu0 0.0
    %1805 = vmatpush1.msra.mxu0 0.0
    %1806 = vmatprep.subr.mxu0 0.0
    %1807 = vmatpush1.msra.mxu0 %v1766
    %1808 = vmatprep.subr.mxu0 0.0
    %1809 = vmatpush2.msra.mxu0 0.0
    %1810 = vmatprep.subr.mxu0 0.0
    %1811 = vmatpush2.msra.mxu0 0.0
    %1812 = vmatprep.subr.mxu0 0.0
    %1813 = vmatpush2.msra.mxu0 0.0
    %1814 = vmatprep.subr.mxu0 0.0
    %1815 = vmatpush2.msra.mxu0 0.0
    %1816 = vmatprep.subr.mxu0 0.0
    %1817 = vmatpush2.msra.mxu0 0.0
    %1818 = vmatprep.subr.mxu0 0.0
    %1819 = vmatpush2.msra.mxu0 0.0
    %1820 = vmatprep.subr.mxu0 0.0
    %1821 = vmatpush2.msra.mxu0 0.0
    %1822 = vmatprep.subr.mxu0 0.0
    %1823 = vmatpush2.msra.mxu0 0.0
    %1824 = vmatprep.subr.mxu0 0.0
    %1825 = vmatpush2.msra.mxu0 0.0
    %1826 = vmatprep.subr.mxu0 0.0
    %1827 = vmatpush2.msra.mxu0 0.0
    %1828 = vmatprep.subr.mxu0 0.0
    %1829 = vmatpush2.msra.mxu0 0.0
    %1830 = vmatprep.subr.mxu0 0.0
    %1831 = vmatpush2.msra.mxu0 0.0
    %1832 = vmatprep.subr.mxu0 0.0
    %1833 = vmatpush2.msra.mxu0 0.0
    %1834 = vmatprep.subr.mxu0 0.0
    %1835 = vmatpush2.msra.mxu0 0.0
    %1836 = vmatprep.subr.mxu0 0.0
    %1837 = vmatpush2.msra.mxu0 0.0
    %1838 = vmatprep.subr.mxu0 0.0
    %1839 = vmatpush2.msra.mxu0 0.0
    %1840 = vmatprep.mubr.f32.mxu0 0.0
    %1841 = vmatmul.mubr.f32.gmra.mxu0 %v1771
    %v1842 = vpop.f32.mrf.mxu0
    %v1843 = vadd.f32 0.0, %v1842
    %v1844 = vpop.f32.mrf.mxu0
    %1845 = vmatprep.mubr.f32.mxu0 0.0
    %1846 = vmatmul.mubr.f32.gmra.mxu0 %v1774
    %v1847 = vpop.f32.mrf.mxu0
    %v1848 = vadd.f32 0.0, %v1847
    %v1849 = vpop.f32.mrf.mxu0
    %1850 = vdwg.mxu0
    %v1852 = vsel %vm980, %v1596, 0
    %v1855 = vsel %vm980, %v1601, 0
    %1857 = vmatprep.subr.mxu0 0.0
    %1858 = vmatpush1.msra.mxu0 0.0
    %1859 = vmatprep.subr.mxu0 0.0
    %1860 = vmatpush1.msra.mxu0 0.0
    %1861 = vmatprep.subr.mxu0 0.0
    %1862 = vmatpush1.msra.mxu0 0.0
    %1863 = vmatprep.subr.mxu0 0.0
    %1864 = vmatpush1.msra.mxu0 0.0
    %1865 = vmatprep.subr.mxu0 0.0
    %1866 = vmatpush1.msra.mxu0 0.0
    %1867 = vmatprep.subr.mxu0 0.0
    %1868 = vmatpush1.msra.mxu0 0.0
    %1869 = vmatprep.subr.mxu0 0.0
    %1870 = vmatpush1.msra.mxu0 0.0
    %1871 = vmatprep.subr.mxu0 0.0
    %1872 = vmatpush1.msra.mxu0 0.0
    %1873 = vmatprep.subr.mxu0 0.0
    %1874 = vmatpush1.msra.mxu0 0.0
    %1875 = vmatprep.subr.mxu0 0.0
    %1876 = vmatpush1.msra.mxu0 0.0
    %1877 = vmatprep.subr.mxu0 0.0
    %1878 = vmatpush1.msra.mxu0 0.0
    %1879 = vmatprep.subr.mxu0 0.0
    %1880 = vmatpush1.msra.mxu0 0.0
    %1881 = vmatprep.subr.mxu0 0.0
    %1882 = vmatpush1.msra.mxu0 0.0
    %1883 = vmatprep.subr.mxu0 0.0
    %1884 = vmatpush1.msra.mxu0 0.0
    %1885 = vmatprep.subr.mxu0 0.0
    %1886 = vmatpush1.msra.mxu0 0.0
    %1887 = vmatprep.subr.mxu0 0.0
    %1888 = vmatpush1.msra.mxu0 %v1767
    %1889 = vmatprep.subr.mxu0 0.0
    %1890 = vmatpush2.msra.mxu0 0.0
    %1891 = vmatprep.subr.mxu0 0.0
    %1892 = vmatpush2.msra.mxu0 0.0
    %1893 = vmatprep.subr.mxu0 0.0
    %1894 = vmatpush2.msra.mxu0 0.0
    %1895 = vmatprep.subr.mxu0 0.0
    %1896 = vmatpush2.msra.mxu0 0.0
    %1897 = vmatprep.subr.mxu0 0.0
    %1898 = vmatpush2.msra.mxu0 0.0
    %1899 = vmatprep.subr.mxu0 0.0
    %1900 = vmatpush2.msra.mxu0 0.0
    %1901 = vmatprep.subr.mxu0 0.0
    %1902 = vmatpush2.msra.mxu0 0.0
    %1903 = vmatprep.subr.mxu0 0.0
    %1904 = vmatpush2.msra.mxu0 0.0
    %1905 = vmatprep.subr.mxu0 0.0
    %1906 = vmatpush2.msra.mxu0 0.0
    %1907 = vmatprep.subr.mxu0 0.0
    %1908 = vmatpush2.msra.mxu0 0.0
    %1909 = vmatprep.subr.mxu0 0.0
    %1910 = vmatpush2.msra.mxu0 0.0
    %1911 = vmatprep.subr.mxu0 0.0
    %1912 = vmatpush2.msra.mxu0 0.0
    %1913 = vmatprep.subr.mxu0 0.0
    %1914 = vmatpush2.msra.mxu0 0.0
    %1915 = vmatprep.subr.mxu0 0.0
    %1916 = vmatpush2.msra.mxu0 0.0
    %1917 = vmatprep.subr.mxu0 0.0
    %1918 = vmatpush2.msra.mxu0 0.0
    %1919 = vmatprep.subr.mxu0 0.0
    %1920 = vmatpush2.msra.mxu0 0.0
    %1921 = vmatprep.mubr.f32.mxu0 0.0
    %1922 = vmatmul.mubr.f32.gmra.mxu0 %v1852
    %v1923 = vpop.f32.mrf.mxu0
    %v1924 = vadd.f32 0.0, %v1923
    %v1925 = vpop.f32.mrf.mxu0
    %1926 = vmatprep.mubr.f32.mxu0 0.0
    %1927 = vmatmul.mubr.f32.gmra.mxu0 %v1855
    %v1928 = vpop.f32.mrf.mxu0
    %v1929 = vadd.f32 0.0, %v1928
    %v1930 = vpop.f32.mrf.mxu0
    %1931 = vdwg.mxu0
    %v1933 = vsel %vm980, %v1677, 0
    %v1936 = vsel %vm980, %v1682, 0
    %1938 = vmatprep.subr.mxu0 0.0
    %1939 = vmatpush1.msra.mxu0 0.0
    %1940 = vmatprep.subr.mxu0 0.0
    %1941 = vmatpush1.msra.mxu0 0.0
    %1942 = vmatprep.subr.mxu0 0.0
    %1943 = vmatpush1.msra.mxu0 0.0
    %1944 = vmatprep.subr.mxu0 0.0
    %1945 = vmatpush1.msra.mxu0 0.0
    %1946 = vmatprep.subr.mxu0 0.0
    %1947 = vmatpush1.msra.mxu0 0.0
    %1948 = vmatprep.subr.mxu0 0.0
    %1949 = vmatpush1.msra.mxu0 0.0
    %1950 = vmatprep.subr.mxu0 0.0
    %1951 = vmatpush1.msra.mxu0 0.0
    %1952 = vmatprep.subr.mxu0 0.0
    %1953 = vmatpush1.msra.mxu0 0.0
    %1954 = vmatprep.subr.mxu0 0.0
    %1955 = vmatpush1.msra.mxu0 0.0
    %1956 = vmatprep.subr.mxu0 0.0
    %1957 = vmatpush1.msra.mxu0 0.0
    %1958 = vmatprep.subr.mxu0 0.0
    %1959 = vmatpush1.msra.mxu0 0.0
    %1960 = vmatprep.subr.mxu0 0.0
    %1961 = vmatpush1.msra.mxu0 0.0
    %1962 = vmatprep.subr.mxu0 0.0
    %1963 = vmatpush1.msra.mxu0 0.0
    %1964 = vmatprep.subr.mxu0 0.0
    %1965 = vmatpush1.msra.mxu0 0.0
    %1966 = vmatprep.subr.mxu0 0.0
    %1967 = vmatpush1.msra.mxu0 0.0
    %1968 = vmatprep.subr.mxu0 0.0
    %1969 = vmatpush1.msra.mxu0 %v1768
    %1970 = vmatprep.subr.mxu0 0.0
    %1971 = vmatpush2.msra.mxu0 0.0
    %1972 = vmatprep.subr.mxu0 0.0
    %1973 = vmatpush2.msra.mxu0 0.0
    %1974 = vmatprep.subr.mxu0 0.0
    %1975 = vmatpush2.msra.mxu0 0.0
    %1976 = vmatprep.subr.mxu0 0.0
    %1977 = vmatpush2.msra.mxu0 0.0
    %1978 = vmatprep.subr.mxu0 0.0
    %1979 = vmatpush2.msra.mxu0 0.0
    %1980 = vmatprep.subr.mxu0 0.0
    %1981 = vmatpush2.msra.mxu0 0.0
    %1982 = vmatprep.subr.mxu0 0.0
    %1983 = vmatpush2.msra.mxu0 0.0
    %1984 = vmatprep.subr.mxu0 0.0
    %1985 = vmatpush2.msra.mxu0 0.0
    %1986 = vmatprep.subr.mxu0 0.0
    %1987 = vmatpush2.msra.mxu0 0.0
    %1988 = vmatprep.subr.mxu0 0.0
    %1989 = vmatpush2.msra.mxu0 0.0
    %1990 = vmatprep.subr.mxu0 0.0
    %1991 = vmatpush2.msra.mxu0 0.0
    %1992 = vmatprep.subr.mxu0 0.0
    %1993 = vmatpush2.msra.mxu0 0.0
    %1994 = vmatprep.subr.mxu0 0.0
    %1995 = vmatpush2.msra.mxu0 0.0
    %1996 = vmatprep.subr.mxu0 0.0
    %1997 = vmatpush2.msra.mxu0 0.0
    %1998 = vmatprep.subr.mxu0 0.0
    %1999 = vmatpush2.msra.mxu0 0.0
    %2000 = vmatprep.subr.mxu0 0.0
    %2001 = vmatpush2.msra.mxu0 0.0
    %2002 = vmatprep.mubr.f32.mxu0 0.0
    %2003 = vmatmul.mubr.f32.gmra.mxu0 %v1933
    %v2004 = vpop.f32.mrf.mxu0
    %v2005 = vadd.f32 0.0, %v2004
    %v2006 = vpop.f32.mrf.mxu0
    %2007 = vmatprep.mubr.f32.mxu0 0.0
    %2008 = vmatmul.mubr.f32.gmra.mxu0 %v1936
    %v2009 = vpop.f32.mrf.mxu0
    %v2010 = vadd.f32 0.0, %v2009
    %v2011 = vpop.f32.mrf.mxu0
    %2012 = vdwg.mxu0
    %v2014 = vsel %vm980, %v1758, 0
    %v2017 = vsel %vm980, %v1763, 0
    %2019 = vmatprep.subr.mxu0 0.0
    %2020 = vmatpush1.msra.mxu0 0.0
    %2021 = vmatprep.subr.mxu0 0.0
    %2022 = vmatpush1.msra.mxu0 0.0
    %2023 = vmatprep.subr.mxu0 0.0
    %2024 = vmatpush1.msra.mxu0 0.0
    %2025 = vmatprep.subr.mxu0 0.0
    %2026 = vmatpush1.msra.mxu0 0.0
    %2027 = vmatprep.subr.mxu0 0.0
    %2028 = vmatpush1.msra.mxu0 0.0
    %2029 = vmatprep.subr.mxu0 0.0
    %2030 = vmatpush1.msra.mxu0 0.0
    %2031 = vmatprep.subr.mxu0 0.0
    %2032 = vmatpush1.msra.mxu0 0.0
    %2033 = vmatprep.subr.mxu0 0.0
    %2034 = vmatpush1.msra.mxu0 0.0
    %2035 = vmatprep.subr.mxu0 0.0
    %2036 = vmatpush1.msra.mxu0 0.0
    %2037 = vmatprep.subr.mxu0 0.0
    %2038 = vmatpush1.msra.mxu0 0.0
    %2039 = vmatprep.subr.mxu0 0.0
    %2040 = vmatpush1.msra.mxu0 0.0
    %2041 = vmatprep.subr.mxu0 0.0
    %2042 = vmatpush1.msra.mxu0 0.0
    %2043 = vmatprep.subr.mxu0 0.0
    %2044 = vmatpush1.msra.mxu0 0.0
    %2045 = vmatprep.subr.mxu0 0.0
    %2046 = vmatpush1.msra.mxu0 0.0
    %2047 = vmatprep.subr.mxu0 0.0
    %2048 = vmatpush1.msra.mxu0 0.0
    %2049 = vmatprep.subr.mxu0 0.0
    %2050 = vmatpush1.msra.mxu0 %v1769
    %2051 = vmatprep.subr.mxu0 0.0
    %2052 = vmatpush2.msra.mxu0 0.0
    %2053 = vmatprep.subr.mxu0 0.0
    %2054 = vmatpush2.msra.mxu0 0.0
    %2055 = vmatprep.subr.mxu0 0.0
    %2056 = vmatpush2.msra.mxu0 0.0
    %2057 = vmatprep.subr.mxu0 0.0
    %2058 = vmatpush2.msra.mxu0 0.0
    %2059 = vmatprep.subr.mxu0 0.0
    %2060 = vmatpush2.msra.mxu0 0.0
    %2061 = vmatprep.subr.mxu0 0.0
    %2062 = vmatpush2.msra.mxu0 0.0
    %2063 = vmatprep.subr.mxu0 0.0
    %2064 = vmatpush2.msra.mxu0 0.0
    %2065 = vmatprep.subr.mxu0 0.0
    %2066 = vmatpush2.msra.mxu0 0.0
    %2067 = vmatprep.subr.mxu0 0.0
    %2068 = vmatpush2.msra.mxu0 0.0
    %2069 = vmatprep.subr.mxu0 0.0
    %2070 = vmatpush2.msra.mxu0 0.0
    %2071 = vmatprep.subr.mxu0 0.0
    %2072 = vmatpush2.msra.mxu0 0.0
    %2073 = vmatprep.subr.mxu0 0.0
    %2074 = vmatpush2.msra.mxu0 0.0
    %2075 = vmatprep.subr.mxu0 0.0
    %2076 = vmatpush2.msra.mxu0 0.0
    %2077 = vmatprep.subr.mxu0 0.0
    %2078 = vmatpush2.msra.mxu0 0.0
    %2079 = vmatprep.subr.mxu0 0.0
    %2080 = vmatpush2.msra.mxu0 0.0
    %2081 = vmatprep.subr.mxu0 0.0
    %2082 = vmatpush2.msra.mxu0 0.0
    %2083 = vmatprep.mubr.f32.mxu0 0.0
    %2084 = vmatmul.mubr.f32.gmra.mxu0 %v2014
    %v2085 = vpop.f32.mrf.mxu0
    %v2086 = vadd.f32 0.0, %v2085
    %v2087 = vpop.f32.mrf.mxu0
    %2088 = vmatprep.mubr.f32.mxu0 0.0
    %2089 = vmatmul.mubr.f32.gmra.mxu0 %v2017
    %v2090 = vpop.f32.mrf.mxu0
    %v2091 = vadd.f32 0.0, %v2090
    %v2092 = vpop.f32.mrf.mxu0
    %2093 = vdwg.mxu0
    %v2094 = vsel %vm71, %v1843, 0.0
    %v2095 = vsel %vm71, %v1924, 0.0
    %v2096 = vadd.f32 %v2094, %v2095
    %v2097 = vsel %vm71, %v2005, 0.0
    %v2098 = vadd.f32 %v2096, %v2097
    %v2099 = vsel %vm71, %v2086, 0.0
    %v2100 = vadd.f32 %v2098, %v2099
    %v2101 = vsel %vm71, %v1848, 0.0
    %v2102 = vsel %vm71, %v1929, 0.0
    %v2103 = vadd.f32 %v2101, %v2102
    %v2104 = vsel %vm71, %v2010, 0.0
    %v2105 = vadd.f32 %v2103, %v2104
    %v2106 = vsel %vm71, %v2091, 0.0
    %v2107 = vadd.f32 %v2105, %v2106
    %v2108 = vld [vmem:[%s3] sm:$0x1]
    %v2110 = vlaneseq
    %v2111 = vshrl.u32 %v2110, 7
    %v2112 = vsub.s32 0, %v2111
    %v2113 = vrot.slane %v2108, %v2112
    %v2115 = vadd.f32 %v2100, %v2113
    %v2116 = vadd.f32 %v2107, %v2113
    %2117 = vst.msk [vmem:[#allocation2] sm:$0xff] %vm71, %v2115
    %2118 = vst.msk [vmem:[#allocation2 + $0x8] sm:$0xff] %vm71, %v2116
    // Predicated region
    $region22: #{tpu_custom_call.1} parent=1 // pred_check
      _
    $region23: #{tpu_custom_call.1} parent=1 // pred_check_branch
      %2120 = sbr.rel (0) target = $region25
    $region24: #{tpu_custom_call.1} parent=1 // pred_region
      %s2122 = ssub.s32 256, 256
      %2123 = vsyncadd [#allocation3], %s2122
      %s2124 = sshll.u32 [#allocation2], 4
      %s2125 = int_to_ptr.vmem [resolvable:$true] %s2124
      %2130 = dma.vmem_to_hbm [thread:$0]  %s2125, 256, %s5, [#allocation3], 128, 128, 8
    $region25: #{tpu_custom_call.1} parent=1 // pred_fallthru
      _
    // Predicated region
    $region26: #{tpu_custom_call.1} parent=1 // pred_check
      _
    $region27: #{tpu_custom_call.1} parent=1 // pred_check_branch
      %2132 = sbr.rel (0) target = $region29
    $region28: #{tpu_custom_call.1} parent=1 // pred_region
      %2133 = dma.done [#allocation3], 256
    $region29: #{tpu_custom_call.1} parent=1 // pred_fallthru
      _
    %2134 = vsyncpa [#allocation3], 1

</llo_original>
